<compile_context>
chip_gen: v5e
topology: v5e:2x2
jax: 0.10.0
libtpu: 0.0.40
codegen_flags: <defaults>
</compile_context>

<pallas_src>
import functools

import jax
import jax.numpy as jnp
from jax import lax
from jax.experimental import pallas as pl
from jax.experimental.pallas import tpu as pltpu


def _round_up(x, m):
    return (x + m - 1) // m * m


def _encoder_kernel(chunk_b, num_sample, feat_dim,
                    idx_ref, nodes_ref,               # scalar prefetch (SMEM, int32)
                    sampw_ref, feat_ref, w_ref,       # VMEM inputs
                    out_ref,                          # output block [cb, E_pad]
                    self_buf, neigh_buf):             # VMEM scratch
    c = pl.program_id(0)
    F = feat_dim

    # ---- In-VMEM gather for the whole node tile -----------------------------
    # feat_ref holds the full feature table; indices come from SMEM, rows are
    # pulled with dynamic sublane slices (no per-row HBM DMAs, no semaphores).
    def gather_row(i, carry):
        b = c * chunk_b + i
        nd = nodes_ref[b]
        self_buf[pl.ds(i, 1), :] = feat_ref[pl.ds(nd, 1), :]          # self row
        for s in range(num_sample):                                   # static unroll
            r = idx_ref[b, s]
            neigh_buf[s, pl.ds(i, 1), :] = feat_ref[pl.ds(r, 1), :]   # neighbor row
        return carry

    lax.fori_loop(0, chunk_b, gather_row, 0, unroll=True)

    # ---- Mean aggregation on the VPU (vectorized over the tile) -------------
    # samp_w already holds 1/|sampled set| (0 for padded samples), so the mean
    # is S scale-and-accumulate steps; no division, no MXU, no lane reduce.
    neigh = jnp.zeros((chunk_b, F), dtype=jnp.float32)
    for s in range(num_sample):
        neigh = neigh + sampw_ref[:, s:s + 1] * neigh_buf[s]

    # ---- Single fused projection + ReLU, lane-dense store --------------------
    # combined = concat([self, neigh], 1); out = relu(combined @ W^T_padded)
    combined = jnp.concatenate([self_buf[...], neigh], axis=-1)       # [cb, 2F]
    out = jnp.dot(combined, w_ref[...], preferred_element_type=jnp.float32)
    out_ref[...] = jnp.maximum(out, 0.0)                              # [cb, E_pad]


def encoder_forward(features, nodes, neigh_idx, samp_w, weight, *, n_chunks=2):
    """GraphSAGE Encoder forward (gcn=False).

    features : [N, F]  f32  full node-feature table (held VMEM-resident)
    nodes    : [B]     i32  batch of node ids
    neigh_idx: [B, S]  i32  sampled neighbor ids per node (glue for adj_lists +
                            random.sample; padded entries get weight 0)
    samp_w   : [B, S]  f32  per-sample mean weight: 1/|sampled set| or 0 (pad)
    weight   : [E, 2F] f32  Encoder.weight
    returns  : [E, B]  f32  == F.relu(weight @ cat([self, neigh], 1).T)
    """
    N, F = features.shape
    B = nodes.shape[0]
    S = neigh_idx.shape[1]
    E = weight.shape[0]
    assert weight.shape[1] == 2 * F
    assert B % n_chunks == 0
    cb = B // n_chunks
    assert cb % 8 == 0, "chunk rows must be sublane (8) aligned"

    # relu(W @ [self; neigh].T).T == relu([self, neigh] @ W.T): one combined,
    # pre-transposed weight [2F, E], zero-padded to a lane-dense E_pad so the
    # kernel's output stores are unmasked full-lane stores.
    E_pad = _round_up(E, 128)
    w_comb_t = jnp.zeros((2 * F, E_pad), jnp.float32).at[:, :E].set(weight.T)

    # Feature table is held VMEM-resident; budget against the smallest-VMEM
    # chip (v7x: 64 MiB physical, 32 MiB scoped default).
    feat_vmem_bytes = 4 * N * max(F, 128)  # (8,128)-tile padded footprint
    assert feat_vmem_bytes < 24 * 1024 * 1024, \
        "feature table too large for VMEM residency"
    # TODO(synk): for tables that do not fit in VMEM, fall back to a bulk
    # per-tile DMA gather from HBM (memory_space=pl.ANY) instead of residency.

    kernel = functools.partial(_encoder_kernel, cb, S, F)

    flops = 2 * B * S * F + 2 * B * (2 * F) * E_pad
    bytes_accessed = 4 * (N * F + 2 * F * E_pad + B * E_pad + 2 * B * S + B)

    out_pad = pl.pallas_call(
        kernel,
        out_shape=jax.ShapeDtypeStruct((B, E_pad), jnp.float32),
        grid_spec=pltpu.PrefetchScalarGridSpec(
            num_scalar_prefetch=2,                     # neigh_idx, nodes -> SMEM
            grid=(n_chunks,),
            in_specs=[
                pl.BlockSpec((cb, S), lambda c, idx, nd: (c, 0)),          # samp_w
                pl.BlockSpec((N, F), lambda c, idx, nd: (0, 0)),           # features
                pl.BlockSpec((2 * F, E_pad), lambda c, idx, nd: (0, 0)),   # W^T (padded)
            ],
            out_specs=pl.BlockSpec((cb, E_pad), lambda c, idx, nd: (c, 0)),
            scratch_shapes=[
                pltpu.VMEM((cb, F), jnp.float32),       # gathered self rows
                pltpu.VMEM((S, cb, F), jnp.float32),    # gathered neighbor rows
            ],
        ),
        compiler_params=pltpu.CompilerParams(
            dimension_semantics=("parallel",),
            vmem_limit_bytes=32 * 1024 * 1024,
        ),
        cost_estimate=pl.CostEstimate(
            flops=flops, transcendentals=0, bytes_accessed=bytes_accessed),
    )(neigh_idx, nodes, samp_w, features, w_comb_t)

    # PyTorch Encoder returns [embed_dim, batch]; slice the lane padding off
    # and restore the module's layout with a tiny wrapper transpose.
    return out_pad[:, :E].T


def reference_forward(features, nodes, neigh_idx, samp_w, weight):
    neigh = jnp.einsum('bs,bsf->bf', samp_w, features[neigh_idx])
    combined = jnp.concatenate([features[nodes], neigh], axis=1)
    return jnp.maximum(weight @ combined.T, 0.0)


if __name__ == "__main__":
    NUM_NODES_TOTAL = 40     # total nodes in the graph (feature table rows)
    FEAT_DIM = 16            # feature_dim
    EMBED_DIM = 32           # embed_dim
    BATCH = 16               # len(nodes); 2 chunks x 8 (sublane-aligned) rows
    NUM_SAMPLE = 10          # num_sample

    key = jax.random.PRNGKey(0)
    k_feat, k_w, k_adj, k_cnt = jax.random.split(key, 4)

    # Feature "embedding table" (stand-in for self.features lookup).
    features = jax.random.normal(k_feat, (NUM_NODES_TOTAL, FEAT_DIM), dtype=jnp.float32)
    nodes = jnp.arange(BATCH, dtype=jnp.int32)

    # Glue standing in for adj_lists + random.sample (without replacement):
    # unique neighbor ids per row; rows with smaller neighbor sets have fewer
    # valid samples and the padded entries get weight 0.
    perm_keys = jax.random.split(k_adj, BATCH)
    perms = jax.vmap(lambda k: jax.random.permutation(k, NUM_NODES_TOTAL))(perm_keys)
    neigh_idx = perms[:, :NUM_SAMPLE].astype(jnp.int32)
    counts = jax.random.randint(k_cnt, (BATCH,), 4, NUM_SAMPLE + 1)
    valid = jnp.arange(NUM_SAMPLE)[None, :] < counts[:, None]
    samp_w = jnp.where(valid, 1.0 / counts[:, None].astype(jnp.float32), 0.0)
    # TODO(synk): the "empty neighbor set -> {self node}" fallback is wrapper
    # glue: such a row would use neigh_idx[b, 0] = nodes[b], samp_w[b] = [1, 0, ...].

    # Xavier-uniform init of weight [embed_dim, 2*feat_dim] (gcn=False).
    fan_in, fan_out = 2 * FEAT_DIM, EMBED_DIM
    bound = (6.0 / (fan_in + fan_out)) ** 0.5
    weight = jax.random.uniform(k_w, (EMBED_DIM, 2 * FEAT_DIM),
                                minval=-bound, maxval=bound, dtype=jnp.float32)

    out = encoder_forward(features, nodes, neigh_idx, samp_w, weight)
    out = jax.block_until_ready(out)

    ref = reference_forward(features, nodes, neigh_idx, samp_w, weight)
    assert out.shape == (EMBED_DIM, BATCH)
    assert jnp.allclose(out, ref, atol=1e-5, rtol=1e-4), \
        float(jnp.max(jnp.abs(out - ref)))

    print("KERNEL_OK")
</pallas_src>

<mosaic_0001>
module attributes {stable_mosaic.version = 11 : i64} {
  func.func @_encoder_kernel(%arg0: i32, %arg1: memref<16x10xi32, #tpu.memory_space<smem>>, %arg2: memref<16xi32, #tpu.memory_space<smem>>, %arg3: memref<8x10xf32, #tpu.memory_space<vmem>>, %arg4: memref<40x16xf32, #tpu.memory_space<vmem>>, %arg5: memref<32x128xf32, #tpu.memory_space<vmem>>, %arg6: memref<8x128xf32, #tpu.memory_space<vmem>>, %arg7: memref<8x16xf32, #tpu.memory_space<vmem>>, %arg8: memref<10x8x16xf32, #tpu.memory_space<vmem>>) attributes {dimension_semantics = [#tpu.dimension_semantics<parallel>], iteration_bounds = array<i64: 2>, scalar_prefetch = 2 : i64, scratch_operands = 2 : i64, tpu.core_type = #tpu.core_type<tc>, window_params = [{transform_indices = @transform_0, window_bounds = array<i64: 8, 10>}, {pipeline_mode = #tpu.pipeline_mode<synchronous>, transform_indices = @transform_1, window_bounds = array<i64: 40, 16>}, {pipeline_mode = #tpu.pipeline_mode<synchronous>, transform_indices = @transform_2, window_bounds = array<i64: 32, 128>}, {transform_indices = @transform_3, window_bounds = array<i64: 8, 128>}]} {
    %c0_i32 = arith.constant 0 : i32
    %c8_i32 = arith.constant 8 : i32
    %0 = arith.muli %arg0, %c8_i32 : i32
    %1 = arith.addi %0, %c0_i32 : i32
    %2 = arith.index_cast %1 : i32 to index
    %3 = memref.load %arg2[%2] : memref<16xi32, #tpu.memory_space<smem>>
    %4 = arith.index_cast %3 : i32 to index
    %c0 = arith.constant 0 : index
    %5 = vector.load %arg4[%4, %c0] : memref<40x16xf32, #tpu.memory_space<vmem>>, vector<1x16xf32>
    %6 = arith.index_cast %c0_i32 : i32 to index
    %c0_0 = arith.constant 0 : index
    %7 = vector.load %arg7[%6, %c0_0] : memref<8x16xf32, #tpu.memory_space<vmem>>, vector<1x16xf32>
    tpu.vector_store %arg7[%6, %c0_0], %5 {strides = array<i32>} : memref<8x16xf32, #tpu.memory_space<vmem>>, vector<1x16xf32>,
    %8 = arith.index_cast %1 : i32 to index
    %c0_1 = arith.constant 0 : index
    %9 = memref.load %arg1[%8, %c0_1] : memref<16x10xi32, #tpu.memory_space<smem>>
    %10 = arith.index_cast %9 : i32 to index
    %c0_2 = arith.constant 0 : index
    %11 = vector.load %arg4[%10, %c0_2] : memref<40x16xf32, #tpu.memory_space<vmem>>, vector<1x16xf32>
    %c0_3 = arith.constant 0 : index
    %12 = arith.index_cast %c0_i32 : i32 to index
    %c0_4 = arith.constant 0 : index
    %13 = vector.load %arg8[%c0_3, %12, %c0_4] : memref<10x8x16xf32, #tpu.memory_space<vmem>>, vector<1x1x16xf32>
    %14 = vector.shape_cast %13 : vector<1x1x16xf32> to vector<1x16xf32>
    %15 = vector.shape_cast %11 : vector<1x16xf32> to vector<1x1x16xf32>
    tpu.vector_store %arg8[%c0_3, %12, %c0_4], %15 {strides = array<i32>} : memref<10x8x16xf32, #tpu.memory_space<vmem>>, vector<1x1x16xf32>,
    %16 = arith.index_cast %1 : i32 to index
    %c1 = arith.constant 1 : index
    %17 = memref.load %arg1[%16, %c1] : memref<16x10xi32, #tpu.memory_space<smem>>
    %18 = arith.index_cast %17 : i32 to index
    %c0_5 = arith.constant 0 : index
    %19 = vector.load %arg4[%18, %c0_5] : memref<40x16xf32, #tpu.memory_space<vmem>>, vector<1x16xf32>
    %c1_6 = arith.constant 1 : index
    %20 = arith.index_cast %c0_i32 : i32 to index
    %c0_7 = arith.constant 0 : index
    %21 = vector.load %arg8[%c1_6, %20, %c0_7] : memref<10x8x16xf32, #tpu.memory_space<vmem>>, vector<1x1x16xf32>
    %22 = vector.shape_cast %21 : vector<1x1x16xf32> to vector<1x16xf32>
    %23 = vector.shape_cast %19 : vector<1x16xf32> to vector<1x1x16xf32>
    tpu.vector_store %arg8[%c1_6, %20, %c0_7], %23 {strides = array<i32>} : memref<10x8x16xf32, #tpu.memory_space<vmem>>, vector<1x1x16xf32>,
    %24 = arith.index_cast %1 : i32 to index
    %c2 = arith.constant 2 : index
    %25 = memref.load %arg1[%24, %c2] : memref<16x10xi32, #tpu.memory_space<smem>>
    %26 = arith.index_cast %25 : i32 to index
    %c0_8 = arith.constant 0 : index
    %27 = vector.load %arg4[%26, %c0_8] : memref<40x16xf32, #tpu.memory_space<vmem>>, vector<1x16xf32>
    %c2_9 = arith.constant 2 : index
    %28 = arith.index_cast %c0_i32 : i32 to index
    %c0_10 = arith.constant 0 : index
    %29 = vector.load %arg8[%c2_9, %28, %c0_10] : memref<10x8x16xf32, #tpu.memory_space<vmem>>, vector<1x1x16xf32>
    %30 = vector.shape_cast %29 : vector<1x1x16xf32> to vector<1x16xf32>
    %31 = vector.shape_cast %27 : vector<1x16xf32> to vector<1x1x16xf32>
    tpu.vector_store %arg8[%c2_9, %28, %c0_10], %31 {strides = array<i32>} : memref<10x8x16xf32, #tpu.memory_space<vmem>>, vector<1x1x16xf32>,
    %32 = arith.index_cast %1 : i32 to index
    %c3 = arith.constant 3 : index
    %33 = memref.load %arg1[%32, %c3] : memref<16x10xi32, #tpu.memory_space<smem>>
    %34 = arith.index_cast %33 : i32 to index
    %c0_11 = arith.constant 0 : index
    %35 = vector.load %arg4[%34, %c0_11] : memref<40x16xf32, #tpu.memory_space<vmem>>, vector<1x16xf32>
    %c3_12 = arith.constant 3 : index
    %36 = arith.index_cast %c0_i32 : i32 to index
    %c0_13 = arith.constant 0 : index
    %37 = vector.load %arg8[%c3_12, %36, %c0_13] : memref<10x8x16xf32, #tpu.memory_space<vmem>>, vector<1x1x16xf32>
    %38 = vector.shape_cast %37 : vector<1x1x16xf32> to vector<1x16xf32>
    %39 = vector.shape_cast %35 : vector<1x16xf32> to vector<1x1x16xf32>
    tpu.vector_store %arg8[%c3_12, %36, %c0_13], %39 {strides = array<i32>} : memref<10x8x16xf32, #tpu.memory_space<vmem>>, vector<1x1x16xf32>,
    %40 = arith.index_cast %1 : i32 to index
    %c4 = arith.constant 4 : index
    %41 = memref.load %arg1[%40, %c4] : memref<16x10xi32, #tpu.memory_space<smem>>
    %42 = arith.index_cast %41 : i32 to index
    %c0_14 = arith.constant 0 : index
    %43 = vector.load %arg4[%42, %c0_14] : memref<40x16xf32, #tpu.memory_space<vmem>>, vector<1x16xf32>
    %c4_15 = arith.constant 4 : index
    %44 = arith.index_cast %c0_i32 : i32 to index
    %c0_16 = arith.constant 0 : index
    %45 = vector.load %arg8[%c4_15, %44, %c0_16] : memref<10x8x16xf32, #tpu.memory_space<vmem>>, vector<1x1x16xf32>
    %46 = vector.shape_cast %45 : vector<1x1x16xf32> to vector<1x16xf32>
    %47 = vector.shape_cast %43 : vector<1x16xf32> to vector<1x1x16xf32>
    tpu.vector_store %arg8[%c4_15, %44, %c0_16], %47 {strides = array<i32>} : memref<10x8x16xf32, #tpu.memory_space<vmem>>, vector<1x1x16xf32>,
    %48 = arith.index_cast %1 : i32 to index
    %c5 = arith.constant 5 : index
    %49 = memref.load %arg1[%48, %c5] : memref<16x10xi32, #tpu.memory_space<smem>>
    %50 = arith.index_cast %49 : i32 to index
    %c0_17 = arith.constant 0 : index
    %51 = vector.load %arg4[%50, %c0_17] : memref<40x16xf32, #tpu.memory_space<vmem>>, vector<1x16xf32>
    %c5_18 = arith.constant 5 : index
    %52 = arith.index_cast %c0_i32 : i32 to index
    %c0_19 = arith.constant 0 : index
    %53 = vector.load %arg8[%c5_18, %52, %c0_19] : memref<10x8x16xf32, #tpu.memory_space<vmem>>, vector<1x1x16xf32>
    %54 = vector.shape_cast %53 : vector<1x1x16xf32> to vector<1x16xf32>
    %55 = vector.shape_cast %51 : vector<1x16xf32> to vector<1x1x16xf32>
    tpu.vector_store %arg8[%c5_18, %52, %c0_19], %55 {strides = array<i32>} : memref<10x8x16xf32, #tpu.memory_space<vmem>>, vector<1x1x16xf32>,
    %56 = arith.index_cast %1 : i32 to index
    %c6 = arith.constant 6 : index
    %57 = memref.load %arg1[%56, %c6] : memref<16x10xi32, #tpu.memory_space<smem>>
    %58 = arith.index_cast %57 : i32 to index
    %c0_20 = arith.constant 0 : index
    %59 = vector.load %arg4[%58, %c0_20] : memref<40x16xf32, #tpu.memory_space<vmem>>, vector<1x16xf32>
    %c6_21 = arith.constant 6 : index
    %60 = arith.index_cast %c0_i32 : i32 to index
    %c0_22 = arith.constant 0 : index
    %61 = vector.load %arg8[%c6_21, %60, %c0_22] : memref<10x8x16xf32, #tpu.memory_space<vmem>>, vector<1x1x16xf32>
    %62 = vector.shape_cast %61 : vector<1x1x16xf32> to vector<1x16xf32>
    %63 = vector.shape_cast %59 : vector<1x16xf32> to vector<1x1x16xf32>
    tpu.vector_store %arg8[%c6_21, %60, %c0_22], %63 {strides = array<i32>} : memref<10x8x16xf32, #tpu.memory_space<vmem>>, vector<1x1x16xf32>,
    %64 = arith.index_cast %1 : i32 to index
    %c7 = arith.constant 7 : index
    %65 = memref.load %arg1[%64, %c7] : memref<16x10xi32, #tpu.memory_space<smem>>
    %66 = arith.index_cast %65 : i32 to index
    %c0_23 = arith.constant 0 : index
    %67 = vector.load %arg4[%66, %c0_23] : memref<40x16xf32, #tpu.memory_space<vmem>>, vector<1x16xf32>
    %c7_24 = arith.constant 7 : index
    %68 = arith.index_cast %c0_i32 : i32 to index
    %c0_25 = arith.constant 0 : index
    %69 = vector.load %arg8[%c7_24, %68, %c0_25] : memref<10x8x16xf32, #tpu.memory_space<vmem>>, vector<1x1x16xf32>
    %70 = vector.shape_cast %69 : vector<1x1x16xf32> to vector<1x16xf32>
    %71 = vector.shape_cast %67 : vector<1x16xf32> to vector<1x1x16xf32>
    tpu.vector_store %arg8[%c7_24, %68, %c0_25], %71 {strides = array<i32>} : memref<10x8x16xf32, #tpu.memory_space<vmem>>, vector<1x1x16xf32>,
    %72 = arith.index_cast %1 : i32 to index
    %c8 = arith.constant 8 : index
    %73 = memref.load %arg1[%72, %c8] : memref<16x10xi32, #tpu.memory_space<smem>>
    %74 = arith.index_cast %73 : i32 to index
    %c0_26 = arith.constant 0 : index
    %75 = vector.load %arg4[%74, %c0_26] : memref<40x16xf32, #tpu.memory_space<vmem>>, vector<1x16xf32>
    %c8_27 = arith.constant 8 : index
    %76 = arith.index_cast %c0_i32 : i32 to index
    %c0_28 = arith.constant 0 : index
    %77 = vector.load %arg8[%c8_27, %76, %c0_28] : memref<10x8x16xf32, #tpu.memory_space<vmem>>, vector<1x1x16xf32>
    %78 = vector.shape_cast %77 : vector<1x1x16xf32> to vector<1x16xf32>
    %79 = vector.shape_cast %75 : vector<1x16xf32> to vector<1x1x16xf32>
    tpu.vector_store %arg8[%c8_27, %76, %c0_28], %79 {strides = array<i32>} : memref<10x8x16xf32, #tpu.memory_space<vmem>>, vector<1x1x16xf32>,
    %80 = arith.index_cast %1 : i32 to index
    %c9 = arith.constant 9 : index
    %81 = memref.load %arg1[%80, %c9] : memref<16x10xi32, #tpu.memory_space<smem>>
    %82 = arith.index_cast %81 : i32 to index
    %c0_29 = arith.constant 0 : index
    %83 = vector.load %arg4[%82, %c0_29] : memref<40x16xf32, #tpu.memory_space<vmem>>, vector<1x16xf32>
    %c9_30 = arith.constant 9 : index
    %84 = arith.index_cast %c0_i32 : i32 to index
    %c0_31 = arith.constant 0 : index
    %85 = vector.load %arg8[%c9_30, %84, %c0_31] : memref<10x8x16xf32, #tpu.memory_space<vmem>>, vector<1x1x16xf32>
    %86 = vector.shape_cast %85 : vector<1x1x16xf32> to vector<1x16xf32>
    %87 = vector.shape_cast %83 : vector<1x16xf32> to vector<1x1x16xf32>
    tpu.vector_store %arg8[%c9_30, %84, %c0_31], %87 {strides = array<i32>} : memref<10x8x16xf32, #tpu.memory_space<vmem>>, vector<1x1x16xf32>,
    %c1_i32 = arith.constant 1 : i32
    %c8_i32_32 = arith.constant 8 : i32
    %88 = arith.muli %arg0, %c8_i32_32 : i32
    %89 = arith.addi %88, %c1_i32 : i32
    %90 = arith.index_cast %89 : i32 to index
    %91 = memref.load %arg2[%90] : memref<16xi32, #tpu.memory_space<smem>>
    %92 = arith.index_cast %91 : i32 to index
    %c0_33 = arith.constant 0 : index
    %93 = vector.load %arg4[%92, %c0_33] : memref<40x16xf32, #tpu.memory_space<vmem>>, vector<1x16xf32>
    %94 = arith.index_cast %c1_i32 : i32 to index
    %c0_34 = arith.constant 0 : index
    %95 = vector.load %arg7[%94, %c0_34] : memref<8x16xf32, #tpu.memory_space<vmem>>, vector<1x16xf32>
    tpu.vector_store %arg7[%94, %c0_34], %93 {strides = array<i32>} : memref<8x16xf32, #tpu.memory_space<vmem>>, vector<1x16xf32>,
    %96 = arith.index_cast %89 : i32 to index
    %c0_35 = arith.constant 0 : index
    %97 = memref.load %arg1[%96, %c0_35] : memref<16x10xi32, #tpu.memory_space<smem>>
    %98 = arith.index_cast %97 : i32 to index
    %c0_36 = arith.constant 0 : index
    %99 = vector.load %arg4[%98, %c0_36] : memref<40x16xf32, #tpu.memory_space<vmem>>, vector<1x16xf32>
    %c0_37 = arith.constant 0 : index
    %100 = arith.index_cast %c1_i32 : i32 to index
    %c0_38 = arith.constant 0 : index
    %101 = vector.load %arg8[%c0_37, %100, %c0_38] : memref<10x8x16xf32, #tpu.memory_space<vmem>>, vector<1x1x16xf32>
    %102 = vector.shape_cast %101 : vector<1x1x16xf32> to vector<1x16xf32>
    %103 = vector.shape_cast %99 : vector<1x16xf32> to vector<1x1x16xf32>
    tpu.vector_store %arg8[%c0_37, %100, %c0_38], %103 {strides = array<i32>} : memref<10x8x16xf32, #tpu.memory_space<vmem>>, vector<1x1x16xf32>,
    %104 = arith.index_cast %89 : i32 to index
    %c1_39 = arith.constant 1 : index
    %105 = memref.load %arg1[%104, %c1_39] : memref<16x10xi32, #tpu.memory_space<smem>>
    %106 = arith.index_cast %105 : i32 to index
    %c0_40 = arith.constant 0 : index
    %107 = vector.load %arg4[%106, %c0_40] : memref<40x16xf32, #tpu.memory_space<vmem>>, vector<1x16xf32>
    %c1_41 = arith.constant 1 : index
    %108 = arith.index_cast %c1_i32 : i32 to index
    %c0_42 = arith.constant 0 : index
    %109 = vector.load %arg8[%c1_41, %108, %c0_42] : memref<10x8x16xf32, #tpu.memory_space<vmem>>, vector<1x1x16xf32>
    %110 = vector.shape_cast %109 : vector<1x1x16xf32> to vector<1x16xf32>
    %111 = vector.shape_cast %107 : vector<1x16xf32> to vector<1x1x16xf32>
    tpu.vector_store %arg8[%c1_41, %108, %c0_42], %111 {strides = array<i32>} : memref<10x8x16xf32, #tpu.memory_space<vmem>>, vector<1x1x16xf32>,
    %112 = arith.index_cast %89 : i32 to index
    %c2_43 = arith.constant 2 : index
    %113 = memref.load %arg1[%112, %c2_43] : memref<16x10xi32, #tpu.memory_space<smem>>
    %114 = arith.index_cast %113 : i32 to index
    %c0_44 = arith.constant 0 : index
    %115 = vector.load %arg4[%114, %c0_44] : memref<40x16xf32, #tpu.memory_space<vmem>>, vector<1x16xf32>
    %c2_45 = arith.constant 2 : index
    %116 = arith.index_cast %c1_i32 : i32 to index
    %c0_46 = arith.constant 0 : index
    %117 = vector.load %arg8[%c2_45, %116, %c0_46] : memref<10x8x16xf32, #tpu.memory_space<vmem>>, vector<1x1x16xf32>
    %118 = vector.shape_cast %117 : vector<1x1x16xf32> to vector<1x16xf32>
    %119 = vector.shape_cast %115 : vector<1x16xf32> to vector<1x1x16xf32>
    tpu.vector_store %arg8[%c2_45, %116, %c0_46], %119 {strides = array<i32>} : memref<10x8x16xf32, #tpu.memory_space<vmem>>, vector<1x1x16xf32>,
    %120 = arith.index_cast %89 : i32 to index
    %c3_47 = arith.constant 3 : index
    %121 = memref.load %arg1[%120, %c3_47] : memref<16x10xi32, #tpu.memory_space<smem>>
    %122 = arith.index_cast %121 : i32 to index
    %c0_48 = arith.constant 0 : index
    %123 = vector.load %arg4[%122, %c0_48] : memref<40x16xf32, #tpu.memory_space<vmem>>, vector<1x16xf32>
    %c3_49 = arith.constant 3 : index
    %124 = arith.index_cast %c1_i32 : i32 to index
    %c0_50 = arith.constant 0 : index
    %125 = vector.load %arg8[%c3_49, %124, %c0_50] : memref<10x8x16xf32, #tpu.memory_space<vmem>>, vector<1x1x16xf32>
    %126 = vector.shape_cast %125 : vector<1x1x16xf32> to vector<1x16xf32>
    %127 = vector.shape_cast %123 : vector<1x16xf32> to vector<1x1x16xf32>
    tpu.vector_store %arg8[%c3_49, %124, %c0_50], %127 {strides = array<i32>} : memref<10x8x16xf32, #tpu.memory_space<vmem>>, vector<1x1x16xf32>,
    %128 = arith.index_cast %89 : i32 to index
    %c4_51 = arith.constant 4 : index
    %129 = memref.load %arg1[%128, %c4_51] : memref<16x10xi32, #tpu.memory_space<smem>>
    %130 = arith.index_cast %129 : i32 to index
    %c0_52 = arith.constant 0 : index
    %131 = vector.load %arg4[%130, %c0_52] : memref<40x16xf32, #tpu.memory_space<vmem>>, vector<1x16xf32>
    %c4_53 = arith.constant 4 : index
    %132 = arith.index_cast %c1_i32 : i32 to index
    %c0_54 = arith.constant 0 : index
    %133 = vector.load %arg8[%c4_53, %132, %c0_54] : memref<10x8x16xf32, #tpu.memory_space<vmem>>, vector<1x1x16xf32>
    %134 = vector.shape_cast %133 : vector<1x1x16xf32> to vector<1x16xf32>
    %135 = vector.shape_cast %131 : vector<1x16xf32> to vector<1x1x16xf32>
    tpu.vector_store %arg8[%c4_53, %132, %c0_54], %135 {strides = array<i32>} : memref<10x8x16xf32, #tpu.memory_space<vmem>>, vector<1x1x16xf32>,
    %136 = arith.index_cast %89 : i32 to index
    %c5_55 = arith.constant 5 : index
    %137 = memref.load %arg1[%136, %c5_55] : memref<16x10xi32, #tpu.memory_space<smem>>
    %138 = arith.index_cast %137 : i32 to index
    %c0_56 = arith.constant 0 : index
    %139 = vector.load %arg4[%138, %c0_56] : memref<40x16xf32, #tpu.memory_space<vmem>>, vector<1x16xf32>
    %c5_57 = arith.constant 5 : index
    %140 = arith.index_cast %c1_i32 : i32 to index
    %c0_58 = arith.constant 0 : index
    %141 = vector.load %arg8[%c5_57, %140, %c0_58] : memref<10x8x16xf32, #tpu.memory_space<vmem>>, vector<1x1x16xf32>
    %142 = vector.shape_cast %141 : vector<1x1x16xf32> to vector<1x16xf32>
    %143 = vector.shape_cast %139 : vector<1x16xf32> to vector<1x1x16xf32>
    tpu.vector_store %arg8[%c5_57, %140, %c0_58], %143 {strides = array<i32>} : memref<10x8x16xf32, #tpu.memory_space<vmem>>, vector<1x1x16xf32>,
    %144 = arith.index_cast %89 : i32 to index
    %c6_59 = arith.constant 6 : index
    %145 = memref.load %arg1[%144, %c6_59] : memref<16x10xi32, #tpu.memory_space<smem>>
    %146 = arith.index_cast %145 : i32 to index
    %c0_60 = arith.constant 0 : index
    %147 = vector.load %arg4[%146, %c0_60] : memref<40x16xf32, #tpu.memory_space<vmem>>, vector<1x16xf32>
    %c6_61 = arith.constant 6 : index
    %148 = arith.index_cast %c1_i32 : i32 to index
    %c0_62 = arith.constant 0 : index
    %149 = vector.load %arg8[%c6_61, %148, %c0_62] : memref<10x8x16xf32, #tpu.memory_space<vmem>>, vector<1x1x16xf32>
    %150 = vector.shape_cast %149 : vector<1x1x16xf32> to vector<1x16xf32>
    %151 = vector.shape_cast %147 : vector<1x16xf32> to vector<1x1x16xf32>
    tpu.vector_store %arg8[%c6_61, %148, %c0_62], %151 {strides = array<i32>} : memref<10x8x16xf32, #tpu.memory_space<vmem>>, vector<1x1x16xf32>,
    %152 = arith.index_cast %89 : i32 to index
    %c7_63 = arith.constant 7 : index
    %153 = memref.load %arg1[%152, %c7_63] : memref<16x10xi32, #tpu.memory_space<smem>>
    %154 = arith.index_cast %153 : i32 to index
    %c0_64 = arith.constant 0 : index
    %155 = vector.load %arg4[%154, %c0_64] : memref<40x16xf32, #tpu.memory_space<vmem>>, vector<1x16xf32>
    %c7_65 = arith.constant 7 : index
    %156 = arith.index_cast %c1_i32 : i32 to index
    %c0_66 = arith.constant 0 : index
    %157 = vector.load %arg8[%c7_65, %156, %c0_66] : memref<10x8x16xf32, #tpu.memory_space<vmem>>, vector<1x1x16xf32>
    %158 = vector.shape_cast %157 : vector<1x1x16xf32> to vector<1x16xf32>
    %159 = vector.shape_cast %155 : vector<1x16xf32> to vector<1x1x16xf32>
    tpu.vector_store %arg8[%c7_65, %156, %c0_66], %159 {strides = array<i32>} : memref<10x8x16xf32, #tpu.memory_space<vmem>>, vector<1x1x16xf32>,
    %160 = arith.index_cast %89 : i32 to index
    %c8_67 = arith.constant 8 : index
    %161 = memref.load %arg1[%160, %c8_67] : memref<16x10xi32, #tpu.memory_space<smem>>
    %162 = arith.index_cast %161 : i32 to index
    %c0_68 = arith.constant 0 : index
    %163 = vector.load %arg4[%162, %c0_68] : memref<40x16xf32, #tpu.memory_space<vmem>>, vector<1x16xf32>
    %c8_69 = arith.constant 8 : index
    %164 = arith.index_cast %c1_i32 : i32 to index
    %c0_70 = arith.constant 0 : index
    %165 = vector.load %arg8[%c8_69, %164, %c0_70] : memref<10x8x16xf32, #tpu.memory_space<vmem>>, vector<1x1x16xf32>
    %166 = vector.shape_cast %165 : vector<1x1x16xf32> to vector<1x16xf32>
    %167 = vector.shape_cast %163 : vector<1x16xf32> to vector<1x1x16xf32>
    tpu.vector_store %arg8[%c8_69, %164, %c0_70], %167 {strides = array<i32>} : memref<10x8x16xf32, #tpu.memory_space<vmem>>, vector<1x1x16xf32>,
    %168 = arith.index_cast %89 : i32 to index
    %c9_71 = arith.constant 9 : index
    %169 = memref.load %arg1[%168, %c9_71] : memref<16x10xi32, #tpu.memory_space<smem>>
    %170 = arith.index_cast %169 : i32 to index
    %c0_72 = arith.constant 0 : index
    %171 = vector.load %arg4[%170, %c0_72] : memref<40x16xf32, #tpu.memory_space<vmem>>, vector<1x16xf32>
    %c9_73 = arith.constant 9 : index
    %172 = arith.index_cast %c1_i32 : i32 to index
    %c0_74 = arith.constant 0 : index
    %173 = vector.load %arg8[%c9_73, %172, %c0_74] : memref<10x8x16xf32, #tpu.memory_space<vmem>>, vector<1x1x16xf32>
    %174 = vector.shape_cast %173 : vector<1x1x16xf32> to vector<1x16xf32>
    %175 = vector.shape_cast %171 : vector<1x16xf32> to vector<1x1x16xf32>
    tpu.vector_store %arg8[%c9_73, %172, %c0_74], %175 {strides = array<i32>} : memref<10x8x16xf32, #tpu.memory_space<vmem>>, vector<1x1x16xf32>,
    %c2_i32 = arith.constant 2 : i32
    %c8_i32_75 = arith.constant 8 : i32
    %176 = arith.muli %arg0, %c8_i32_75 : i32
    %177 = arith.addi %176, %c2_i32 : i32
    %178 = arith.index_cast %177 : i32 to index
    %179 = memref.load %arg2[%178] : memref<16xi32, #tpu.memory_space<smem>>
    %180 = arith.index_cast %179 : i32 to index
    %c0_76 = arith.constant 0 : index
    %181 = vector.load %arg4[%180, %c0_76] : memref<40x16xf32, #tpu.memory_space<vmem>>, vector<1x16xf32>
    %182 = arith.index_cast %c2_i32 : i32 to index
    %c0_77 = arith.constant 0 : index
    %183 = vector.load %arg7[%182, %c0_77] : memref<8x16xf32, #tpu.memory_space<vmem>>, vector<1x16xf32>
    tpu.vector_store %arg7[%182, %c0_77], %181 {strides = array<i32>} : memref<8x16xf32, #tpu.memory_space<vmem>>, vector<1x16xf32>,
    %184 = arith.index_cast %177 : i32 to index
    %c0_78 = arith.constant 0 : index
    %185 = memref.load %arg1[%184, %c0_78] : memref<16x10xi32, #tpu.memory_space<smem>>
    %186 = arith.index_cast %185 : i32 to index
    %c0_79 = arith.constant 0 : index
    %187 = vector.load %arg4[%186, %c0_79] : memref<40x16xf32, #tpu.memory_space<vmem>>, vector<1x16xf32>
    %c0_80 = arith.constant 0 : index
    %188 = arith.index_cast %c2_i32 : i32 to index
    %c0_81 = arith.constant 0 : index
    %189 = vector.load %arg8[%c0_80, %188, %c0_81] : memref<10x8x16xf32, #tpu.memory_space<vmem>>, vector<1x1x16xf32>
    %190 = vector.shape_cast %189 : vector<1x1x16xf32> to vector<1x16xf32>
    %191 = vector.shape_cast %187 : vector<1x16xf32> to vector<1x1x16xf32>
    tpu.vector_store %arg8[%c0_80, %188, %c0_81], %191 {strides = array<i32>} : memref<10x8x16xf32, #tpu.memory_space<vmem>>, vector<1x1x16xf32>,
    %192 = arith.index_cast %177 : i32 to index
    %c1_82 = arith.constant 1 : index
    %193 = memref.load %arg1[%192, %c1_82] : memref<16x10xi32, #tpu.memory_space<smem>>
    %194 = arith.index_cast %193 : i32 to index
    %c0_83 = arith.constant 0 : index
    %195 = vector.load %arg4[%194, %c0_83] : memref<40x16xf32, #tpu.memory_space<vmem>>, vector<1x16xf32>
    %c1_84 = arith.constant 1 : index
    %196 = arith.index_cast %c2_i32 : i32 to index
    %c0_85 = arith.constant 0 : index
    %197 = vector.load %arg8[%c1_84, %196, %c0_85] : memref<10x8x16xf32, #tpu.memory_space<vmem>>, vector<1x1x16xf32>
    %198 = vector.shape_cast %197 : vector<1x1x16xf32> to vector<1x16xf32>
    %199 = vector.shape_cast %195 : vector<1x16xf32> to vector<1x1x16xf32>
    tpu.vector_store %arg8[%c1_84, %196, %c0_85], %199 {strides = array<i32>} : memref<10x8x16xf32, #tpu.memory_space<vmem>>, vector<1x1x16xf32>,
    %200 = arith.index_cast %177 : i32 to index
    %c2_86 = arith.constant 2 : index
    %201 = memref.load %arg1[%200, %c2_86] : memref<16x10xi32, #tpu.memory_space<smem>>
    %202 = arith.index_cast %201 : i32 to index
    %c0_87 = arith.constant 0 : index
    %203 = vector.load %arg4[%202, %c0_87] : memref<40x16xf32, #tpu.memory_space<vmem>>, vector<1x16xf32>
    %c2_88 = arith.constant 2 : index
    %204 = arith.index_cast %c2_i32 : i32 to index
    %c0_89 = arith.constant 0 : index
    %205 = vector.load %arg8[%c2_88, %204, %c0_89] : memref<10x8x16xf32, #tpu.memory_space<vmem>>, vector<1x1x16xf32>
    %206 = vector.shape_cast %205 : vector<1x1x16xf32> to vector<1x16xf32>
    %207 = vector.shape_cast %203 : vector<1x16xf32> to vector<1x1x16xf32>
    tpu.vector_store %arg8[%c2_88, %204, %c0_89], %207 {strides = array<i32>} : memref<10x8x16xf32, #tpu.memory_space<vmem>>, vector<1x1x16xf32>,
    %208 = arith.index_cast %177 : i32 to index
    %c3_90 = arith.constant 3 : index
    %209 = memref.load %arg1[%208, %c3_90] : memref<16x10xi32, #tpu.memory_space<smem>>
    %210 = arith.index_cast %209 : i32 to index
    %c0_91 = arith.constant 0 : index
    %211 = vector.load %arg4[%210, %c0_91] : memref<40x16xf32, #tpu.memory_space<vmem>>, vector<1x16xf32>
    %c3_92 = arith.constant 3 : index
    %212 = arith.index_cast %c2_i32 : i32 to index
    %c0_93 = arith.constant 0 : index
    %213 = vector.load %arg8[%c3_92, %212, %c0_93] : memref<10x8x16xf32, #tpu.memory_space<vmem>>, vector<1x1x16xf32>
    %214 = vector.shape_cast %213 : vector<1x1x16xf32> to vector<1x16xf32>
    %215 = vector.shape_cast %211 : vector<1x16xf32> to vector<1x1x16xf32>
    tpu.vector_store %arg8[%c3_92, %212, %c0_93], %215 {strides = array<i32>} : memref<10x8x16xf32, #tpu.memory_space<vmem>>, vector<1x1x16xf32>,
    %216 = arith.index_cast %177 : i32 to index
    %c4_94 = arith.constant 4 : index
    %217 = memref.load %arg1[%216, %c4_94] : memref<16x10xi32, #tpu.memory_space<smem>>
    %218 = arith.index_cast %217 : i32 to index
    %c0_95 = arith.constant 0 : index
    %219 = vector.load %arg4[%218, %c0_95] : memref<40x16xf32, #tpu.memory_space<vmem>>, vector<1x16xf32>
    %c4_96 = arith.constant 4 : index
    %220 = arith.index_cast %c2_i32 : i32 to index
    %c0_97 = arith.constant 0 : index
    %221 = vector.load %arg8[%c4_96, %220, %c0_97] : memref<10x8x16xf32, #tpu.memory_space<vmem>>, vector<1x1x16xf32>
    %222 = vector.shape_cast %221 : vector<1x1x16xf32> to vector<1x16xf32>
    %223 = vector.shape_cast %219 : vector<1x16xf32> to vector<1x1x16xf32>
    tpu.vector_store %arg8[%c4_96, %220, %c0_97], %223 {strides = array<i32>} : memref<10x8x16xf32, #tpu.memory_space<vmem>>, vector<1x1x16xf32>,
    %224 = arith.index_cast %177 : i32 to index
    %c5_98 = arith.constant 5 : index
    %225 = memref.load %arg1[%224, %c5_98] : memref<16x10xi32, #tpu.memory_space<smem>>
    %226 = arith.index_cast %225 : i32 to index
    %c0_99 = arith.constant 0 : index
    %227 = vector.load %arg4[%226, %c0_99] : memref<40x16xf32, #tpu.memory_space<vmem>>, vector<1x16xf32>
    %c5_100 = arith.constant 5 : index
    %228 = arith.index_cast %c2_i32 : i32 to index
    %c0_101 = arith.constant 0 : index
    %229 = vector.load %arg8[%c5_100, %228, %c0_101] : memref<10x8x16xf32, #tpu.memory_space<vmem>>, vector<1x1x16xf32>
    %230 = vector.shape_cast %229 : vector<1x1x16xf32> to vector<1x16xf32>
    %231 = vector.shape_cast %227 : vector<1x16xf32> to vector<1x1x16xf32>
    tpu.vector_store %arg8[%c5_100, %228, %c0_101], %231 {strides = array<i32>} : memref<10x8x16xf32, #tpu.memory_space<vmem>>, vector<1x1x16xf32>,
    %232 = arith.index_cast %177 : i32 to index
    %c6_102 = arith.constant 6 : index
    %233 = memref.load %arg1[%232, %c6_102] : memref<16x10xi32, #tpu.memory_space<smem>>
    %234 = arith.index_cast %233 : i32 to index
    %c0_103 = arith.constant 0 : index
    %235 = vector.load %arg4[%234, %c0_103] : memref<40x16xf32, #tpu.memory_space<vmem>>, vector<1x16xf32>
    %c6_104 = arith.constant 6 : index
    %236 = arith.index_cast %c2_i32 : i32 to index
    %c0_105 = arith.constant 0 : index
    %237 = vector.load %arg8[%c6_104, %236, %c0_105] : memref<10x8x16xf32, #tpu.memory_space<vmem>>, vector<1x1x16xf32>
    %238 = vector.shape_cast %237 : vector<1x1x16xf32> to vector<1x16xf32>
    %239 = vector.shape_cast %235 : vector<1x16xf32> to vector<1x1x16xf32>
    tpu.vector_store %arg8[%c6_104, %236, %c0_105], %239 {strides = array<i32>} : memref<10x8x16xf32, #tpu.memory_space<vmem>>, vector<1x1x16xf32>,
    %240 = arith.index_cast %177 : i32 to index
    %c7_106 = arith.constant 7 : index
    %241 = memref.load %arg1[%240, %c7_106] : memref<16x10xi32, #tpu.memory_space<smem>>
    %242 = arith.index_cast %241 : i32 to index
    %c0_107 = arith.constant 0 : index
    %243 = vector.load %arg4[%242, %c0_107] : memref<40x16xf32, #tpu.memory_space<vmem>>, vector<1x16xf32>
    %c7_108 = arith.constant 7 : index
    %244 = arith.index_cast %c2_i32 : i32 to index
    %c0_109 = arith.constant 0 : index
    %245 = vector.load %arg8[%c7_108, %244, %c0_109] : memref<10x8x16xf32, #tpu.memory_space<vmem>>, vector<1x1x16xf32>
    %246 = vector.shape_cast %245 : vector<1x1x16xf32> to vector<1x16xf32>
    %247 = vector.shape_cast %243 : vector<1x16xf32> to vector<1x1x16xf32>
    tpu.vector_store %arg8[%c7_108, %244, %c0_109], %247 {strides = array<i32>} : memref<10x8x16xf32, #tpu.memory_space<vmem>>, vector<1x1x16xf32>,
    %248 = arith.index_cast %177 : i32 to index
    %c8_110 = arith.constant 8 : index
    %249 = memref.load %arg1[%248, %c8_110] : memref<16x10xi32, #tpu.memory_space<smem>>
    %250 = arith.index_cast %249 : i32 to index
    %c0_111 = arith.constant 0 : index
    %251 = vector.load %arg4[%250, %c0_111] : memref<40x16xf32, #tpu.memory_space<vmem>>, vector<1x16xf32>
    %c8_112 = arith.constant 8 : index
    %252 = arith.index_cast %c2_i32 : i32 to index
    %c0_113 = arith.constant 0 : index
    %253 = vector.load %arg8[%c8_112, %252, %c0_113] : memref<10x8x16xf32, #tpu.memory_space<vmem>>, vector<1x1x16xf32>
    %254 = vector.shape_cast %253 : vector<1x1x16xf32> to vector<1x16xf32>
    %255 = vector.shape_cast %251 : vector<1x16xf32> to vector<1x1x16xf32>
    tpu.vector_store %arg8[%c8_112, %252, %c0_113], %255 {strides = array<i32>} : memref<10x8x16xf32, #tpu.memory_space<vmem>>, vector<1x1x16xf32>,
    %256 = arith.index_cast %177 : i32 to index
    %c9_114 = arith.constant 9 : index
    %257 = memref.load %arg1[%256, %c9_114] : memref<16x10xi32, #tpu.memory_space<smem>>
    %258 = arith.index_cast %257 : i32 to index
    %c0_115 = arith.constant 0 : index
    %259 = vector.load %arg4[%258, %c0_115] : memref<40x16xf32, #tpu.memory_space<vmem>>, vector<1x16xf32>
    %c9_116 = arith.constant 9 : index
    %260 = arith.index_cast %c2_i32 : i32 to index
    %c0_117 = arith.constant 0 : index
    %261 = vector.load %arg8[%c9_116, %260, %c0_117] : memref<10x8x16xf32, #tpu.memory_space<vmem>>, vector<1x1x16xf32>
    %262 = vector.shape_cast %261 : vector<1x1x16xf32> to vector<1x16xf32>
    %263 = vector.shape_cast %259 : vector<1x16xf32> to vector<1x1x16xf32>
    tpu.vector_store %arg8[%c9_116, %260, %c0_117], %263 {strides = array<i32>} : memref<10x8x16xf32, #tpu.memory_space<vmem>>, vector<1x1x16xf32>,
    %c3_i32 = arith.constant 3 : i32
    %c8_i32_118 = arith.constant 8 : i32
    %264 = arith.muli %arg0, %c8_i32_118 : i32
    %265 = arith.addi %264, %c3_i32 : i32
    %266 = arith.index_cast %265 : i32 to index
    %267 = memref.load %arg2[%266] : memref<16xi32, #tpu.memory_space<smem>>
    %268 = arith.index_cast %267 : i32 to index
    %c0_119 = arith.constant 0 : index
    %269 = vector.load %arg4[%268, %c0_119] : memref<40x16xf32, #tpu.memory_space<vmem>>, vector<1x16xf32>
    %270 = arith.index_cast %c3_i32 : i32 to index
    %c0_120 = arith.constant 0 : index
    %271 = vector.load %arg7[%270, %c0_120] : memref<8x16xf32, #tpu.memory_space<vmem>>, vector<1x16xf32>
    tpu.vector_store %arg7[%270, %c0_120], %269 {strides = array<i32>} : memref<8x16xf32, #tpu.memory_space<vmem>>, vector<1x16xf32>,
    %272 = arith.index_cast %265 : i32 to index
    %c0_121 = arith.constant 0 : index
    %273 = memref.load %arg1[%272, %c0_121] : memref<16x10xi32, #tpu.memory_space<smem>>
    %274 = arith.index_cast %273 : i32 to index
    %c0_122 = arith.constant 0 : index
    %275 = vector.load %arg4[%274, %c0_122] : memref<40x16xf32, #tpu.memory_space<vmem>>, vector<1x16xf32>
    %c0_123 = arith.constant 0 : index
    %276 = arith.index_cast %c3_i32 : i32 to index
    %c0_124 = arith.constant 0 : index
    %277 = vector.load %arg8[%c0_123, %276, %c0_124] : memref<10x8x16xf32, #tpu.memory_space<vmem>>, vector<1x1x16xf32>
    %278 = vector.shape_cast %277 : vector<1x1x16xf32> to vector<1x16xf32>
    %279 = vector.shape_cast %275 : vector<1x16xf32> to vector<1x1x16xf32>
    tpu.vector_store %arg8[%c0_123, %276, %c0_124], %279 {strides = array<i32>} : memref<10x8x16xf32, #tpu.memory_space<vmem>>, vector<1x1x16xf32>,
    %280 = arith.index_cast %265 : i32 to index
    %c1_125 = arith.constant 1 : index
    %281 = memref.load %arg1[%280, %c1_125] : memref<16x10xi32, #tpu.memory_space<smem>>
    %282 = arith.index_cast %281 : i32 to index
    %c0_126 = arith.constant 0 : index
    %283 = vector.load %arg4[%282, %c0_126] : memref<40x16xf32, #tpu.memory_space<vmem>>, vector<1x16xf32>
    %c1_127 = arith.constant 1 : index
    %284 = arith.index_cast %c3_i32 : i32 to index
    %c0_128 = arith.constant 0 : index
    %285 = vector.load %arg8[%c1_127, %284, %c0_128] : memref<10x8x16xf32, #tpu.memory_space<vmem>>, vector<1x1x16xf32>
    %286 = vector.shape_cast %285 : vector<1x1x16xf32> to vector<1x16xf32>
    %287 = vector.shape_cast %283 : vector<1x16xf32> to vector<1x1x16xf32>
    tpu.vector_store %arg8[%c1_127, %284, %c0_128], %287 {strides = array<i32>} : memref<10x8x16xf32, #tpu.memory_space<vmem>>, vector<1x1x16xf32>,
    %288 = arith.index_cast %265 : i32 to index
    %c2_129 = arith.constant 2 : index
    %289 = memref.load %arg1[%288, %c2_129] : memref<16x10xi32, #tpu.memory_space<smem>>
    %290 = arith.index_cast %289 : i32 to index
    %c0_130 = arith.constant 0 : index
    %291 = vector.load %arg4[%290, %c0_130] : memref<40x16xf32, #tpu.memory_space<vmem>>, vector<1x16xf32>
    %c2_131 = arith.constant 2 : index
    %292 = arith.index_cast %c3_i32 : i32 to index
    %c0_132 = arith.constant 0 : index
    %293 = vector.load %arg8[%c2_131, %292, %c0_132] : memref<10x8x16xf32, #tpu.memory_space<vmem>>, vector<1x1x16xf32>
    %294 = vector.shape_cast %293 : vector<1x1x16xf32> to vector<1x16xf32>
    %295 = vector.shape_cast %291 : vector<1x16xf32> to vector<1x1x16xf32>
    tpu.vector_store %arg8[%c2_131, %292, %c0_132], %295 {strides = array<i32>} : memref<10x8x16xf32, #tpu.memory_space<vmem>>, vector<1x1x16xf32>,
    %296 = arith.index_cast %265 : i32 to index
    %c3_133 = arith.constant 3 : index
    %297 = memref.load %arg1[%296, %c3_133] : memref<16x10xi32, #tpu.memory_space<smem>>
    %298 = arith.index_cast %297 : i32 to index
    %c0_134 = arith.constant 0 : index
    %299 = vector.load %arg4[%298, %c0_134] : memref<40x16xf32, #tpu.memory_space<vmem>>, vector<1x16xf32>
    %c3_135 = arith.constant 3 : index
    %300 = arith.index_cast %c3_i32 : i32 to index
    %c0_136 = arith.constant 0 : index
    %301 = vector.load %arg8[%c3_135, %300, %c0_136] : memref<10x8x16xf32, #tpu.memory_space<vmem>>, vector<1x1x16xf32>
    %302 = vector.shape_cast %301 : vector<1x1x16xf32> to vector<1x16xf32>
    %303 = vector.shape_cast %299 : vector<1x16xf32> to vector<1x1x16xf32>
    tpu.vector_store %arg8[%c3_135, %300, %c0_136], %303 {strides = array<i32>} : memref<10x8x16xf32, #tpu.memory_space<vmem>>, vector<1x1x16xf32>,
    %304 = arith.index_cast %265 : i32 to index
    %c4_137 = arith.constant 4 : index
    %305 = memref.load %arg1[%304, %c4_137] : memref<16x10xi32, #tpu.memory_space<smem>>
    %306 = arith.index_cast %305 : i32 to index
    %c0_138 = arith.constant 0 : index
    %307 = vector.load %arg4[%306, %c0_138] : memref<40x16xf32, #tpu.memory_space<vmem>>, vector<1x16xf32>
    %c4_139 = arith.constant 4 : index
    %308 = arith.index_cast %c3_i32 : i32 to index
    %c0_140 = arith.constant 0 : index
    %309 = vector.load %arg8[%c4_139, %308, %c0_140] : memref<10x8x16xf32, #tpu.memory_space<vmem>>, vector<1x1x16xf32>
    %310 = vector.shape_cast %309 : vector<1x1x16xf32> to vector<1x16xf32>
    %311 = vector.shape_cast %307 : vector<1x16xf32> to vector<1x1x16xf32>
    tpu.vector_store %arg8[%c4_139, %308, %c0_140], %311 {strides = array<i32>} : memref<10x8x16xf32, #tpu.memory_space<vmem>>, vector<1x1x16xf32>,
    %312 = arith.index_cast %265 : i32 to index
    %c5_141 = arith.constant 5 : index
    %313 = memref.load %arg1[%312, %c5_141] : memref<16x10xi32, #tpu.memory_space<smem>>
    %314 = arith.index_cast %313 : i32 to index
    %c0_142 = arith.constant 0 : index
    %315 = vector.load %arg4[%314, %c0_142] : memref<40x16xf32, #tpu.memory_space<vmem>>, vector<1x16xf32>
    %c5_143 = arith.constant 5 : index
    %316 = arith.index_cast %c3_i32 : i32 to index
    %c0_144 = arith.constant 0 : index
    %317 = vector.load %arg8[%c5_143, %316, %c0_144] : memref<10x8x16xf32, #tpu.memory_space<vmem>>, vector<1x1x16xf32>
    %318 = vector.shape_cast %317 : vector<1x1x16xf32> to vector<1x16xf32>
    %319 = vector.shape_cast %315 : vector<1x16xf32> to vector<1x1x16xf32>
    tpu.vector_store %arg8[%c5_143, %316, %c0_144], %319 {strides = array<i32>} : memref<10x8x16xf32, #tpu.memory_space<vmem>>, vector<1x1x16xf32>,
    %320 = arith.index_cast %265 : i32 to index
    %c6_145 = arith.constant 6 : index
    %321 = memref.load %arg1[%320, %c6_145] : memref<16x10xi32, #tpu.memory_space<smem>>
    %322 = arith.index_cast %321 : i32 to index
    %c0_146 = arith.constant 0 : index
    %323 = vector.load %arg4[%322, %c0_146] : memref<40x16xf32, #tpu.memory_space<vmem>>, vector<1x16xf32>
    %c6_147 = arith.constant 6 : index
    %324 = arith.index_cast %c3_i32 : i32 to index
    %c0_148 = arith.constant 0 : index
    %325 = vector.load %arg8[%c6_147, %324, %c0_148] : memref<10x8x16xf32, #tpu.memory_space<vmem>>, vector<1x1x16xf32>
    %326 = vector.shape_cast %325 : vector<1x1x16xf32> to vector<1x16xf32>
    %327 = vector.shape_cast %323 : vector<1x16xf32> to vector<1x1x16xf32>
    tpu.vector_store %arg8[%c6_147, %324, %c0_148], %327 {strides = array<i32>} : memref<10x8x16xf32, #tpu.memory_space<vmem>>, vector<1x1x16xf32>,
    %328 = arith.index_cast %265 : i32 to index
    %c7_149 = arith.constant 7 : index
    %329 = memref.load %arg1[%328, %c7_149] : memref<16x10xi32, #tpu.memory_space<smem>>
    %330 = arith.index_cast %329 : i32 to index
    %c0_150 = arith.constant 0 : index
    %331 = vector.load %arg4[%330, %c0_150] : memref<40x16xf32, #tpu.memory_space<vmem>>, vector<1x16xf32>
    %c7_151 = arith.constant 7 : index
    %332 = arith.index_cast %c3_i32 : i32 to index
    %c0_152 = arith.constant 0 : index
    %333 = vector.load %arg8[%c7_151, %332, %c0_152] : memref<10x8x16xf32, #tpu.memory_space<vmem>>, vector<1x1x16xf32>
    %334 = vector.shape_cast %333 : vector<1x1x16xf32> to vector<1x16xf32>
    %335 = vector.shape_cast %331 : vector<1x16xf32> to vector<1x1x16xf32>
    tpu.vector_store %arg8[%c7_151, %332, %c0_152], %335 {strides = array<i32>} : memref<10x8x16xf32, #tpu.memory_space<vmem>>, vector<1x1x16xf32>,
    %336 = arith.index_cast %265 : i32 to index
    %c8_153 = arith.constant 8 : index
    %337 = memref.load %arg1[%336, %c8_153] : memref<16x10xi32, #tpu.memory_space<smem>>
    %338 = arith.index_cast %337 : i32 to index
    %c0_154 = arith.constant 0 : index
    %339 = vector.load %arg4[%338, %c0_154] : memref<40x16xf32, #tpu.memory_space<vmem>>, vector<1x16xf32>
    %c8_155 = arith.constant 8 : index
    %340 = arith.index_cast %c3_i32 : i32 to index
    %c0_156 = arith.constant 0 : index
    %341 = vector.load %arg8[%c8_155, %340, %c0_156] : memref<10x8x16xf32, #tpu.memory_space<vmem>>, vector<1x1x16xf32>
    %342 = vector.shape_cast %341 : vector<1x1x16xf32> to vector<1x16xf32>
    %343 = vector.shape_cast %339 : vector<1x16xf32> to vector<1x1x16xf32>
    tpu.vector_store %arg8[%c8_155, %340, %c0_156], %343 {strides = array<i32>} : memref<10x8x16xf32, #tpu.memory_space<vmem>>, vector<1x1x16xf32>,
    %344 = arith.index_cast %265 : i32 to index
    %c9_157 = arith.constant 9 : index
    %345 = memref.load %arg1[%344, %c9_157] : memref<16x10xi32, #tpu.memory_space<smem>>
    %346 = arith.index_cast %345 : i32 to index
    %c0_158 = arith.constant 0 : index
    %347 = vector.load %arg4[%346, %c0_158] : memref<40x16xf32, #tpu.memory_space<vmem>>, vector<1x16xf32>
    %c9_159 = arith.constant 9 : index
    %348 = arith.index_cast %c3_i32 : i32 to index
    %c0_160 = arith.constant 0 : index
    %349 = vector.load %arg8[%c9_159, %348, %c0_160] : memref<10x8x16xf32, #tpu.memory_space<vmem>>, vector<1x1x16xf32>
    %350 = vector.shape_cast %349 : vector<1x1x16xf32> to vector<1x16xf32>
    %351 = vector.shape_cast %347 : vector<1x16xf32> to vector<1x1x16xf32>
    tpu.vector_store %arg8[%c9_159, %348, %c0_160], %351 {strides = array<i32>} : memref<10x8x16xf32, #tpu.memory_space<vmem>>, vector<1x1x16xf32>,
    %c4_i32 = arith.constant 4 : i32
    %c8_i32_161 = arith.constant 8 : i32
    %352 = arith.muli %arg0, %c8_i32_161 : i32
    %353 = arith.addi %352, %c4_i32 : i32
    %354 = arith.index_cast %353 : i32 to index
    %355 = memref.load %arg2[%354] : memref<16xi32, #tpu.memory_space<smem>>
    %356 = arith.index_cast %355 : i32 to index
    %c0_162 = arith.constant 0 : index
    %357 = vector.load %arg4[%356, %c0_162] : memref<40x16xf32, #tpu.memory_space<vmem>>, vector<1x16xf32>
    %358 = arith.index_cast %c4_i32 : i32 to index
    %c0_163 = arith.constant 0 : index
    %359 = vector.load %arg7[%358, %c0_163] : memref<8x16xf32, #tpu.memory_space<vmem>>, vector<1x16xf32>
    tpu.vector_store %arg7[%358, %c0_163], %357 {strides = array<i32>} : memref<8x16xf32, #tpu.memory_space<vmem>>, vector<1x16xf32>,
    %360 = arith.index_cast %353 : i32 to index
    %c0_164 = arith.constant 0 : index
    %361 = memref.load %arg1[%360, %c0_164] : memref<16x10xi32, #tpu.memory_space<smem>>
    %362 = arith.index_cast %361 : i32 to index
    %c0_165 = arith.constant 0 : index
    %363 = vector.load %arg4[%362, %c0_165] : memref<40x16xf32, #tpu.memory_space<vmem>>, vector<1x16xf32>
    %c0_166 = arith.constant 0 : index
    %364 = arith.index_cast %c4_i32 : i32 to index
    %c0_167 = arith.constant 0 : index
    %365 = vector.load %arg8[%c0_166, %364, %c0_167] : memref<10x8x16xf32, #tpu.memory_space<vmem>>, vector<1x1x16xf32>
    %366 = vector.shape_cast %365 : vector<1x1x16xf32> to vector<1x16xf32>
    %367 = vector.shape_cast %363 : vector<1x16xf32> to vector<1x1x16xf32>
    tpu.vector_store %arg8[%c0_166, %364, %c0_167], %367 {strides = array<i32>} : memref<10x8x16xf32, #tpu.memory_space<vmem>>, vector<1x1x16xf32>,
    %368 = arith.index_cast %353 : i32 to index
    %c1_168 = arith.constant 1 : index
    %369 = memref.load %arg1[%368, %c1_168] : memref<16x10xi32, #tpu.memory_space<smem>>
    %370 = arith.index_cast %369 : i32 to index
    %c0_169 = arith.constant 0 : index
    %371 = vector.load %arg4[%370, %c0_169] : memref<40x16xf32, #tpu.memory_space<vmem>>, vector<1x16xf32>
    %c1_170 = arith.constant 1 : index
    %372 = arith.index_cast %c4_i32 : i32 to index
    %c0_171 = arith.constant 0 : index
    %373 = vector.load %arg8[%c1_170, %372, %c0_171] : memref<10x8x16xf32, #tpu.memory_space<vmem>>, vector<1x1x16xf32>
    %374 = vector.shape_cast %373 : vector<1x1x16xf32> to vector<1x16xf32>
    %375 = vector.shape_cast %371 : vector<1x16xf32> to vector<1x1x16xf32>
    tpu.vector_store %arg8[%c1_170, %372, %c0_171], %375 {strides = array<i32>} : memref<10x8x16xf32, #tpu.memory_space<vmem>>, vector<1x1x16xf32>,
    %376 = arith.index_cast %353 : i32 to index
    %c2_172 = arith.constant 2 : index
    %377 = memref.load %arg1[%376, %c2_172] : memref<16x10xi32, #tpu.memory_space<smem>>
    %378 = arith.index_cast %377 : i32 to index
    %c0_173 = arith.constant 0 : index
    %379 = vector.load %arg4[%378, %c0_173] : memref<40x16xf32, #tpu.memory_space<vmem>>, vector<1x16xf32>
    %c2_174 = arith.constant 2 : index
    %380 = arith.index_cast %c4_i32 : i32 to index
    %c0_175 = arith.constant 0 : index
    %381 = vector.load %arg8[%c2_174, %380, %c0_175] : memref<10x8x16xf32, #tpu.memory_space<vmem>>, vector<1x1x16xf32>
    %382 = vector.shape_cast %381 : vector<1x1x16xf32> to vector<1x16xf32>
    %383 = vector.shape_cast %379 : vector<1x16xf32> to vector<1x1x16xf32>
    tpu.vector_store %arg8[%c2_174, %380, %c0_175], %383 {strides = array<i32>} : memref<10x8x16xf32, #tpu.memory_space<vmem>>, vector<1x1x16xf32>,
    %384 = arith.index_cast %353 : i32 to index
    %c3_176 = arith.constant 3 : index
    %385 = memref.load %arg1[%384, %c3_176] : memref<16x10xi32, #tpu.memory_space<smem>>
    %386 = arith.index_cast %385 : i32 to index
    %c0_177 = arith.constant 0 : index
    %387 = vector.load %arg4[%386, %c0_177] : memref<40x16xf32, #tpu.memory_space<vmem>>, vector<1x16xf32>
    %c3_178 = arith.constant 3 : index
    %388 = arith.index_cast %c4_i32 : i32 to index
    %c0_179 = arith.constant 0 : index
    %389 = vector.load %arg8[%c3_178, %388, %c0_179] : memref<10x8x16xf32, #tpu.memory_space<vmem>>, vector<1x1x16xf32>
    %390 = vector.shape_cast %389 : vector<1x1x16xf32> to vector<1x16xf32>
    %391 = vector.shape_cast %387 : vector<1x16xf32> to vector<1x1x16xf32>
    tpu.vector_store %arg8[%c3_178, %388, %c0_179], %391 {strides = array<i32>} : memref<10x8x16xf32, #tpu.memory_space<vmem>>, vector<1x1x16xf32>,
    %392 = arith.index_cast %353 : i32 to index
    %c4_180 = arith.constant 4 : index
    %393 = memref.load %arg1[%392, %c4_180] : memref<16x10xi32, #tpu.memory_space<smem>>
    %394 = arith.index_cast %393 : i32 to index
    %c0_181 = arith.constant 0 : index
    %395 = vector.load %arg4[%394, %c0_181] : memref<40x16xf32, #tpu.memory_space<vmem>>, vector<1x16xf32>
    %c4_182 = arith.constant 4 : index
    %396 = arith.index_cast %c4_i32 : i32 to index
    %c0_183 = arith.constant 0 : index
    %397 = vector.load %arg8[%c4_182, %396, %c0_183] : memref<10x8x16xf32, #tpu.memory_space<vmem>>, vector<1x1x16xf32>
    %398 = vector.shape_cast %397 : vector<1x1x16xf32> to vector<1x16xf32>
    %399 = vector.shape_cast %395 : vector<1x16xf32> to vector<1x1x16xf32>
    tpu.vector_store %arg8[%c4_182, %396, %c0_183], %399 {strides = array<i32>} : memref<10x8x16xf32, #tpu.memory_space<vmem>>, vector<1x1x16xf32>,
    %400 = arith.index_cast %353 : i32 to index
    %c5_184 = arith.constant 5 : index
    %401 = memref.load %arg1[%400, %c5_184] : memref<16x10xi32, #tpu.memory_space<smem>>
    %402 = arith.index_cast %401 : i32 to index
    %c0_185 = arith.constant 0 : index
    %403 = vector.load %arg4[%402, %c0_185] : memref<40x16xf32, #tpu.memory_space<vmem>>, vector<1x16xf32>
    %c5_186 = arith.constant 5 : index
    %404 = arith.index_cast %c4_i32 : i32 to index
    %c0_187 = arith.constant 0 : index
    %405 = vector.load %arg8[%c5_186, %404, %c0_187] : memref<10x8x16xf32, #tpu.memory_space<vmem>>, vector<1x1x16xf32>
    %406 = vector.shape_cast %405 : vector<1x1x16xf32> to vector<1x16xf32>
    %407 = vector.shape_cast %403 : vector<1x16xf32> to vector<1x1x16xf32>
    tpu.vector_store %arg8[%c5_186, %404, %c0_187], %407 {strides = array<i32>} : memref<10x8x16xf32, #tpu.memory_space<vmem>>, vector<1x1x16xf32>,
    %408 = arith.index_cast %353 : i32 to index
    %c6_188 = arith.constant 6 : index
    %409 = memref.load %arg1[%408, %c6_188] : memref<16x10xi32, #tpu.memory_space<smem>>
    %410 = arith.index_cast %409 : i32 to index
    %c0_189 = arith.constant 0 : index
    %411 = vector.load %arg4[%410, %c0_189] : memref<40x16xf32, #tpu.memory_space<vmem>>, vector<1x16xf32>
    %c6_190 = arith.constant 6 : index
    %412 = arith.index_cast %c4_i32 : i32 to index
    %c0_191 = arith.constant 0 : index
    %413 = vector.load %arg8[%c6_190, %412, %c0_191] : memref<10x8x16xf32, #tpu.memory_space<vmem>>, vector<1x1x16xf32>
    %414 = vector.shape_cast %413 : vector<1x1x16xf32> to vector<1x16xf32>
    %415 = vector.shape_cast %411 : vector<1x16xf32> to vector<1x1x16xf32>
    tpu.vector_store %arg8[%c6_190, %412, %c0_191], %415 {strides = array<i32>} : memref<10x8x16xf32, #tpu.memory_space<vmem>>, vector<1x1x16xf32>,
    %416 = arith.index_cast %353 : i32 to index
    %c7_192 = arith.constant 7 : index
    %417 = memref.load %arg1[%416, %c7_192] : memref<16x10xi32, #tpu.memory_space<smem>>
    %418 = arith.index_cast %417 : i32 to index
    %c0_193 = arith.constant 0 : index
    %419 = vector.load %arg4[%418, %c0_193] : memref<40x16xf32, #tpu.memory_space<vmem>>, vector<1x16xf32>
    %c7_194 = arith.constant 7 : index
    %420 = arith.index_cast %c4_i32 : i32 to index
    %c0_195 = arith.constant 0 : index
    %421 = vector.load %arg8[%c7_194, %420, %c0_195] : memref<10x8x16xf32, #tpu.memory_space<vmem>>, vector<1x1x16xf32>
    %422 = vector.shape_cast %421 : vector<1x1x16xf32> to vector<1x16xf32>
    %423 = vector.shape_cast %419 : vector<1x16xf32> to vector<1x1x16xf32>
    tpu.vector_store %arg8[%c7_194, %420, %c0_195], %423 {strides = array<i32>} : memref<10x8x16xf32, #tpu.memory_space<vmem>>, vector<1x1x16xf32>,
    %424 = arith.index_cast %353 : i32 to index
    %c8_196 = arith.constant 8 : index
    %425 = memref.load %arg1[%424, %c8_196] : memref<16x10xi32, #tpu.memory_space<smem>>
    %426 = arith.index_cast %425 : i32 to index
    %c0_197 = arith.constant 0 : index
    %427 = vector.load %arg4[%426, %c0_197] : memref<40x16xf32, #tpu.memory_space<vmem>>, vector<1x16xf32>
    %c8_198 = arith.constant 8 : index
    %428 = arith.index_cast %c4_i32 : i32 to index
    %c0_199 = arith.constant 0 : index
    %429 = vector.load %arg8[%c8_198, %428, %c0_199] : memref<10x8x16xf32, #tpu.memory_space<vmem>>, vector<1x1x16xf32>
    %430 = vector.shape_cast %429 : vector<1x1x16xf32> to vector<1x16xf32>
    %431 = vector.shape_cast %427 : vector<1x16xf32> to vector<1x1x16xf32>
    tpu.vector_store %arg8[%c8_198, %428, %c0_199], %431 {strides = array<i32>} : memref<10x8x16xf32, #tpu.memory_space<vmem>>, vector<1x1x16xf32>,
    %432 = arith.index_cast %353 : i32 to index
    %c9_200 = arith.constant 9 : index
    %433 = memref.load %arg1[%432, %c9_200] : memref<16x10xi32, #tpu.memory_space<smem>>
    %434 = arith.index_cast %433 : i32 to index
    %c0_201 = arith.constant 0 : index
    %435 = vector.load %arg4[%434, %c0_201] : memref<40x16xf32, #tpu.memory_space<vmem>>, vector<1x16xf32>
    %c9_202 = arith.constant 9 : index
    %436 = arith.index_cast %c4_i32 : i32 to index
    %c0_203 = arith.constant 0 : index
    %437 = vector.load %arg8[%c9_202, %436, %c0_203] : memref<10x8x16xf32, #tpu.memory_space<vmem>>, vector<1x1x16xf32>
    %438 = vector.shape_cast %437 : vector<1x1x16xf32> to vector<1x16xf32>
    %439 = vector.shape_cast %435 : vector<1x16xf32> to vector<1x1x16xf32>
    tpu.vector_store %arg8[%c9_202, %436, %c0_203], %439 {strides = array<i32>} : memref<10x8x16xf32, #tpu.memory_space<vmem>>, vector<1x1x16xf32>,
    %c5_i32 = arith.constant 5 : i32
    %c8_i32_204 = arith.constant 8 : i32
    %440 = arith.muli %arg0, %c8_i32_204 : i32
    %441 = arith.addi %440, %c5_i32 : i32
    %442 = arith.index_cast %441 : i32 to index
    %443 = memref.load %arg2[%442] : memref<16xi32, #tpu.memory_space<smem>>
    %444 = arith.index_cast %443 : i32 to index
    %c0_205 = arith.constant 0 : index
    %445 = vector.load %arg4[%444, %c0_205] : memref<40x16xf32, #tpu.memory_space<vmem>>, vector<1x16xf32>
    %446 = arith.index_cast %c5_i32 : i32 to index
    %c0_206 = arith.constant 0 : index
    %447 = vector.load %arg7[%446, %c0_206] : memref<8x16xf32, #tpu.memory_space<vmem>>, vector<1x16xf32>
    tpu.vector_store %arg7[%446, %c0_206], %445 {strides = array<i32>} : memref<8x16xf32, #tpu.memory_space<vmem>>, vector<1x16xf32>,
    %448 = arith.index_cast %441 : i32 to index
    %c0_207 = arith.constant 0 : index
    %449 = memref.load %arg1[%448, %c0_207] : memref<16x10xi32, #tpu.memory_space<smem>>
    %450 = arith.index_cast %449 : i32 to index
    %c0_208 = arith.constant 0 : index
    %451 = vector.load %arg4[%450, %c0_208] : memref<40x16xf32, #tpu.memory_space<vmem>>, vector<1x16xf32>
    %c0_209 = arith.constant 0 : index
    %452 = arith.index_cast %c5_i32 : i32 to index
    %c0_210 = arith.constant 0 : index
    %453 = vector.load %arg8[%c0_209, %452, %c0_210] : memref<10x8x16xf32, #tpu.memory_space<vmem>>, vector<1x1x16xf32>
    %454 = vector.shape_cast %453 : vector<1x1x16xf32> to vector<1x16xf32>
    %455 = vector.shape_cast %451 : vector<1x16xf32> to vector<1x1x16xf32>
    tpu.vector_store %arg8[%c0_209, %452, %c0_210], %455 {strides = array<i32>} : memref<10x8x16xf32, #tpu.memory_space<vmem>>, vector<1x1x16xf32>,
    %456 = arith.index_cast %441 : i32 to index
    %c1_211 = arith.constant 1 : index
    %457 = memref.load %arg1[%456, %c1_211] : memref<16x10xi32, #tpu.memory_space<smem>>
    %458 = arith.index_cast %457 : i32 to index
    %c0_212 = arith.constant 0 : index
    %459 = vector.load %arg4[%458, %c0_212] : memref<40x16xf32, #tpu.memory_space<vmem>>, vector<1x16xf32>
    %c1_213 = arith.constant 1 : index
    %460 = arith.index_cast %c5_i32 : i32 to index
    %c0_214 = arith.constant 0 : index
    %461 = vector.load %arg8[%c1_213, %460, %c0_214] : memref<10x8x16xf32, #tpu.memory_space<vmem>>, vector<1x1x16xf32>
    %462 = vector.shape_cast %461 : vector<1x1x16xf32> to vector<1x16xf32>
    %463 = vector.shape_cast %459 : vector<1x16xf32> to vector<1x1x16xf32>
    tpu.vector_store %arg8[%c1_213, %460, %c0_214], %463 {strides = array<i32>} : memref<10x8x16xf32, #tpu.memory_space<vmem>>, vector<1x1x16xf32>,
    %464 = arith.index_cast %441 : i32 to index
    %c2_215 = arith.constant 2 : index
    %465 = memref.load %arg1[%464, %c2_215] : memref<16x10xi32, #tpu.memory_space<smem>>
    %466 = arith.index_cast %465 : i32 to index
    %c0_216 = arith.constant 0 : index
    %467 = vector.load %arg4[%466, %c0_216] : memref<40x16xf32, #tpu.memory_space<vmem>>, vector<1x16xf32>
    %c2_217 = arith.constant 2 : index
    %468 = arith.index_cast %c5_i32 : i32 to index
    %c0_218 = arith.constant 0 : index
    %469 = vector.load %arg8[%c2_217, %468, %c0_218] : memref<10x8x16xf32, #tpu.memory_space<vmem>>, vector<1x1x16xf32>
    %470 = vector.shape_cast %469 : vector<1x1x16xf32> to vector<1x16xf32>
    %471 = vector.shape_cast %467 : vector<1x16xf32> to vector<1x1x16xf32>
    tpu.vector_store %arg8[%c2_217, %468, %c0_218], %471 {strides = array<i32>} : memref<10x8x16xf32, #tpu.memory_space<vmem>>, vector<1x1x16xf32>,
    %472 = arith.index_cast %441 : i32 to index
    %c3_219 = arith.constant 3 : index
    %473 = memref.load %arg1[%472, %c3_219] : memref<16x10xi32, #tpu.memory_space<smem>>
    %474 = arith.index_cast %473 : i32 to index
    %c0_220 = arith.constant 0 : index
    %475 = vector.load %arg4[%474, %c0_220] : memref<40x16xf32, #tpu.memory_space<vmem>>, vector<1x16xf32>
    %c3_221 = arith.constant 3 : index
    %476 = arith.index_cast %c5_i32 : i32 to index
    %c0_222 = arith.constant 0 : index
    %477 = vector.load %arg8[%c3_221, %476, %c0_222] : memref<10x8x16xf32, #tpu.memory_space<vmem>>, vector<1x1x16xf32>
    %478 = vector.shape_cast %477 : vector<1x1x16xf32> to vector<1x16xf32>
    %479 = vector.shape_cast %475 : vector<1x16xf32> to vector<1x1x16xf32>
    tpu.vector_store %arg8[%c3_221, %476, %c0_222], %479 {strides = array<i32>} : memref<10x8x16xf32, #tpu.memory_space<vmem>>, vector<1x1x16xf32>,
    %480 = arith.index_cast %441 : i32 to index
    %c4_223 = arith.constant 4 : index
    %481 = memref.load %arg1[%480, %c4_223] : memref<16x10xi32, #tpu.memory_space<smem>>
    %482 = arith.index_cast %481 : i32 to index
    %c0_224 = arith.constant 0 : index
    %483 = vector.load %arg4[%482, %c0_224] : memref<40x16xf32, #tpu.memory_space<vmem>>, vector<1x16xf32>
    %c4_225 = arith.constant 4 : index
    %484 = arith.index_cast %c5_i32 : i32 to index
    %c0_226 = arith.constant 0 : index
    %485 = vector.load %arg8[%c4_225, %484, %c0_226] : memref<10x8x16xf32, #tpu.memory_space<vmem>>, vector<1x1x16xf32>
    %486 = vector.shape_cast %485 : vector<1x1x16xf32> to vector<1x16xf32>
    %487 = vector.shape_cast %483 : vector<1x16xf32> to vector<1x1x16xf32>
    tpu.vector_store %arg8[%c4_225, %484, %c0_226], %487 {strides = array<i32>} : memref<10x8x16xf32, #tpu.memory_space<vmem>>, vector<1x1x16xf32>,
    %488 = arith.index_cast %441 : i32 to index
    %c5_227 = arith.constant 5 : index
    %489 = memref.load %arg1[%488, %c5_227] : memref<16x10xi32, #tpu.memory_space<smem>>
    %490 = arith.index_cast %489 : i32 to index
    %c0_228 = arith.constant 0 : index
    %491 = vector.load %arg4[%490, %c0_228] : memref<40x16xf32, #tpu.memory_space<vmem>>, vector<1x16xf32>
    %c5_229 = arith.constant 5 : index
    %492 = arith.index_cast %c5_i32 : i32 to index
    %c0_230 = arith.constant 0 : index
    %493 = vector.load %arg8[%c5_229, %492, %c0_230] : memref<10x8x16xf32, #tpu.memory_space<vmem>>, vector<1x1x16xf32>
    %494 = vector.shape_cast %493 : vector<1x1x16xf32> to vector<1x16xf32>
    %495 = vector.shape_cast %491 : vector<1x16xf32> to vector<1x1x16xf32>
    tpu.vector_store %arg8[%c5_229, %492, %c0_230], %495 {strides = array<i32>} : memref<10x8x16xf32, #tpu.memory_space<vmem>>, vector<1x1x16xf32>,
    %496 = arith.index_cast %441 : i32 to index
    %c6_231 = arith.constant 6 : index
    %497 = memref.load %arg1[%496, %c6_231] : memref<16x10xi32, #tpu.memory_space<smem>>
    %498 = arith.index_cast %497 : i32 to index
    %c0_232 = arith.constant 0 : index
    %499 = vector.load %arg4[%498, %c0_232] : memref<40x16xf32, #tpu.memory_space<vmem>>, vector<1x16xf32>
    %c6_233 = arith.constant 6 : index
    %500 = arith.index_cast %c5_i32 : i32 to index
    %c0_234 = arith.constant 0 : index
    %501 = vector.load %arg8[%c6_233, %500, %c0_234] : memref<10x8x16xf32, #tpu.memory_space<vmem>>, vector<1x1x16xf32>
    %502 = vector.shape_cast %501 : vector<1x1x16xf32> to vector<1x16xf32>
    %503 = vector.shape_cast %499 : vector<1x16xf32> to vector<1x1x16xf32>
    tpu.vector_store %arg8[%c6_233, %500, %c0_234], %503 {strides = array<i32>} : memref<10x8x16xf32, #tpu.memory_space<vmem>>, vector<1x1x16xf32>,
    %504 = arith.index_cast %441 : i32 to index
    %c7_235 = arith.constant 7 : index
    %505 = memref.load %arg1[%504, %c7_235] : memref<16x10xi32, #tpu.memory_space<smem>>
    %506 = arith.index_cast %505 : i32 to index
    %c0_236 = arith.constant 0 : index
    %507 = vector.load %arg4[%506, %c0_236] : memref<40x16xf32, #tpu.memory_space<vmem>>, vector<1x16xf32>
    %c7_237 = arith.constant 7 : index
    %508 = arith.index_cast %c5_i32 : i32 to index
    %c0_238 = arith.constant 0 : index
    %509 = vector.load %arg8[%c7_237, %508, %c0_238] : memref<10x8x16xf32, #tpu.memory_space<vmem>>, vector<1x1x16xf32>
    %510 = vector.shape_cast %509 : vector<1x1x16xf32> to vector<1x16xf32>
    %511 = vector.shape_cast %507 : vector<1x16xf32> to vector<1x1x16xf32>
    tpu.vector_store %arg8[%c7_237, %508, %c0_238], %511 {strides = array<i32>} : memref<10x8x16xf32, #tpu.memory_space<vmem>>, vector<1x1x16xf32>,
    %512 = arith.index_cast %441 : i32 to index
    %c8_239 = arith.constant 8 : index
    %513 = memref.load %arg1[%512, %c8_239] : memref<16x10xi32, #tpu.memory_space<smem>>
    %514 = arith.index_cast %513 : i32 to index
    %c0_240 = arith.constant 0 : index
    %515 = vector.load %arg4[%514, %c0_240] : memref<40x16xf32, #tpu.memory_space<vmem>>, vector<1x16xf32>
    %c8_241 = arith.constant 8 : index
    %516 = arith.index_cast %c5_i32 : i32 to index
    %c0_242 = arith.constant 0 : index
    %517 = vector.load %arg8[%c8_241, %516, %c0_242] : memref<10x8x16xf32, #tpu.memory_space<vmem>>, vector<1x1x16xf32>
    %518 = vector.shape_cast %517 : vector<1x1x16xf32> to vector<1x16xf32>
    %519 = vector.shape_cast %515 : vector<1x16xf32> to vector<1x1x16xf32>
    tpu.vector_store %arg8[%c8_241, %516, %c0_242], %519 {strides = array<i32>} : memref<10x8x16xf32, #tpu.memory_space<vmem>>, vector<1x1x16xf32>,
    %520 = arith.index_cast %441 : i32 to index
    %c9_243 = arith.constant 9 : index
    %521 = memref.load %arg1[%520, %c9_243] : memref<16x10xi32, #tpu.memory_space<smem>>
    %522 = arith.index_cast %521 : i32 to index
    %c0_244 = arith.constant 0 : index
    %523 = vector.load %arg4[%522, %c0_244] : memref<40x16xf32, #tpu.memory_space<vmem>>, vector<1x16xf32>
    %c9_245 = arith.constant 9 : index
    %524 = arith.index_cast %c5_i32 : i32 to index
    %c0_246 = arith.constant 0 : index
    %525 = vector.load %arg8[%c9_245, %524, %c0_246] : memref<10x8x16xf32, #tpu.memory_space<vmem>>, vector<1x1x16xf32>
    %526 = vector.shape_cast %525 : vector<1x1x16xf32> to vector<1x16xf32>
    %527 = vector.shape_cast %523 : vector<1x16xf32> to vector<1x1x16xf32>
    tpu.vector_store %arg8[%c9_245, %524, %c0_246], %527 {strides = array<i32>} : memref<10x8x16xf32, #tpu.memory_space<vmem>>, vector<1x1x16xf32>,
    %c6_i32 = arith.constant 6 : i32
    %c8_i32_247 = arith.constant 8 : i32
    %528 = arith.muli %arg0, %c8_i32_247 : i32
    %529 = arith.addi %528, %c6_i32 : i32
    %530 = arith.index_cast %529 : i32 to index
    %531 = memref.load %arg2[%530] : memref<16xi32, #tpu.memory_space<smem>>
    %532 = arith.index_cast %531 : i32 to index
    %c0_248 = arith.constant 0 : index
    %533 = vector.load %arg4[%532, %c0_248] : memref<40x16xf32, #tpu.memory_space<vmem>>, vector<1x16xf32>
    %534 = arith.index_cast %c6_i32 : i32 to index
    %c0_249 = arith.constant 0 : index
    %535 = vector.load %arg7[%534, %c0_249] : memref<8x16xf32, #tpu.memory_space<vmem>>, vector<1x16xf32>
    tpu.vector_store %arg7[%534, %c0_249], %533 {strides = array<i32>} : memref<8x16xf32, #tpu.memory_space<vmem>>, vector<1x16xf32>,
    %536 = arith.index_cast %529 : i32 to index
    %c0_250 = arith.constant 0 : index
    %537 = memref.load %arg1[%536, %c0_250] : memref<16x10xi32, #tpu.memory_space<smem>>
    %538 = arith.index_cast %537 : i32 to index
    %c0_251 = arith.constant 0 : index
    %539 = vector.load %arg4[%538, %c0_251] : memref<40x16xf32, #tpu.memory_space<vmem>>, vector<1x16xf32>
    %c0_252 = arith.constant 0 : index
    %540 = arith.index_cast %c6_i32 : i32 to index
    %c0_253 = arith.constant 0 : index
    %541 = vector.load %arg8[%c0_252, %540, %c0_253] : memref<10x8x16xf32, #tpu.memory_space<vmem>>, vector<1x1x16xf32>
    %542 = vector.shape_cast %541 : vector<1x1x16xf32> to vector<1x16xf32>
    %543 = vector.shape_cast %539 : vector<1x16xf32> to vector<1x1x16xf32>
    tpu.vector_store %arg8[%c0_252, %540, %c0_253], %543 {strides = array<i32>} : memref<10x8x16xf32, #tpu.memory_space<vmem>>, vector<1x1x16xf32>,
    %544 = arith.index_cast %529 : i32 to index
    %c1_254 = arith.constant 1 : index
    %545 = memref.load %arg1[%544, %c1_254] : memref<16x10xi32, #tpu.memory_space<smem>>
    %546 = arith.index_cast %545 : i32 to index
    %c0_255 = arith.constant 0 : index
    %547 = vector.load %arg4[%546, %c0_255] : memref<40x16xf32, #tpu.memory_space<vmem>>, vector<1x16xf32>
    %c1_256 = arith.constant 1 : index
    %548 = arith.index_cast %c6_i32 : i32 to index
    %c0_257 = arith.constant 0 : index
    %549 = vector.load %arg8[%c1_256, %548, %c0_257] : memref<10x8x16xf32, #tpu.memory_space<vmem>>, vector<1x1x16xf32>
    %550 = vector.shape_cast %549 : vector<1x1x16xf32> to vector<1x16xf32>
    %551 = vector.shape_cast %547 : vector<1x16xf32> to vector<1x1x16xf32>
    tpu.vector_store %arg8[%c1_256, %548, %c0_257], %551 {strides = array<i32>} : memref<10x8x16xf32, #tpu.memory_space<vmem>>, vector<1x1x16xf32>,
    %552 = arith.index_cast %529 : i32 to index
    %c2_258 = arith.constant 2 : index
    %553 = memref.load %arg1[%552, %c2_258] : memref<16x10xi32, #tpu.memory_space<smem>>
    %554 = arith.index_cast %553 : i32 to index
    %c0_259 = arith.constant 0 : index
    %555 = vector.load %arg4[%554, %c0_259] : memref<40x16xf32, #tpu.memory_space<vmem>>, vector<1x16xf32>
    %c2_260 = arith.constant 2 : index
    %556 = arith.index_cast %c6_i32 : i32 to index
    %c0_261 = arith.constant 0 : index
    %557 = vector.load %arg8[%c2_260, %556, %c0_261] : memref<10x8x16xf32, #tpu.memory_space<vmem>>, vector<1x1x16xf32>
    %558 = vector.shape_cast %557 : vector<1x1x16xf32> to vector<1x16xf32>
    %559 = vector.shape_cast %555 : vector<1x16xf32> to vector<1x1x16xf32>
    tpu.vector_store %arg8[%c2_260, %556, %c0_261], %559 {strides = array<i32>} : memref<10x8x16xf32, #tpu.memory_space<vmem>>, vector<1x1x16xf32>,
    %560 = arith.index_cast %529 : i32 to index
    %c3_262 = arith.constant 3 : index
    %561 = memref.load %arg1[%560, %c3_262] : memref<16x10xi32, #tpu.memory_space<smem>>
    %562 = arith.index_cast %561 : i32 to index
    %c0_263 = arith.constant 0 : index
    %563 = vector.load %arg4[%562, %c0_263] : memref<40x16xf32, #tpu.memory_space<vmem>>, vector<1x16xf32>
    %c3_264 = arith.constant 3 : index
    %564 = arith.index_cast %c6_i32 : i32 to index
    %c0_265 = arith.constant 0 : index
    %565 = vector.load %arg8[%c3_264, %564, %c0_265] : memref<10x8x16xf32, #tpu.memory_space<vmem>>, vector<1x1x16xf32>
    %566 = vector.shape_cast %565 : vector<1x1x16xf32> to vector<1x16xf32>
    %567 = vector.shape_cast %563 : vector<1x16xf32> to vector<1x1x16xf32>
    tpu.vector_store %arg8[%c3_264, %564, %c0_265], %567 {strides = array<i32>} : memref<10x8x16xf32, #tpu.memory_space<vmem>>, vector<1x1x16xf32>,
    %568 = arith.index_cast %529 : i32 to index
    %c4_266 = arith.constant 4 : index
    %569 = memref.load %arg1[%568, %c4_266] : memref<16x10xi32, #tpu.memory_space<smem>>
    %570 = arith.index_cast %569 : i32 to index
    %c0_267 = arith.constant 0 : index
    %571 = vector.load %arg4[%570, %c0_267] : memref<40x16xf32, #tpu.memory_space<vmem>>, vector<1x16xf32>
    %c4_268 = arith.constant 4 : index
    %572 = arith.index_cast %c6_i32 : i32 to index
    %c0_269 = arith.constant 0 : index
    %573 = vector.load %arg8[%c4_268, %572, %c0_269] : memref<10x8x16xf32, #tpu.memory_space<vmem>>, vector<1x1x16xf32>
    %574 = vector.shape_cast %573 : vector<1x1x16xf32> to vector<1x16xf32>
    %575 = vector.shape_cast %571 : vector<1x16xf32> to vector<1x1x16xf32>
    tpu.vector_store %arg8[%c4_268, %572, %c0_269], %575 {strides = array<i32>} : memref<10x8x16xf32, #tpu.memory_space<vmem>>, vector<1x1x16xf32>,
    %576 = arith.index_cast %529 : i32 to index
    %c5_270 = arith.constant 5 : index
    %577 = memref.load %arg1[%576, %c5_270] : memref<16x10xi32, #tpu.memory_space<smem>>
    %578 = arith.index_cast %577 : i32 to index
    %c0_271 = arith.constant 0 : index
    %579 = vector.load %arg4[%578, %c0_271] : memref<40x16xf32, #tpu.memory_space<vmem>>, vector<1x16xf32>
    %c5_272 = arith.constant 5 : index
    %580 = arith.index_cast %c6_i32 : i32 to index
    %c0_273 = arith.constant 0 : index
    %581 = vector.load %arg8[%c5_272, %580, %c0_273] : memref<10x8x16xf32, #tpu.memory_space<vmem>>, vector<1x1x16xf32>
    %582 = vector.shape_cast %581 : vector<1x1x16xf32> to vector<1x16xf32>
    %583 = vector.shape_cast %579 : vector<1x16xf32> to vector<1x1x16xf32>
    tpu.vector_store %arg8[%c5_272, %580, %c0_273], %583 {strides = array<i32>} : memref<10x8x16xf32, #tpu.memory_space<vmem>>, vector<1x1x16xf32>,
    %584 = arith.index_cast %529 : i32 to index
    %c6_274 = arith.constant 6 : index
    %585 = memref.load %arg1[%584, %c6_274] : memref<16x10xi32, #tpu.memory_space<smem>>
    %586 = arith.index_cast %585 : i32 to index
    %c0_275 = arith.constant 0 : index
    %587 = vector.load %arg4[%586, %c0_275] : memref<40x16xf32, #tpu.memory_space<vmem>>, vector<1x16xf32>
    %c6_276 = arith.constant 6 : index
    %588 = arith.index_cast %c6_i32 : i32 to index
    %c0_277 = arith.constant 0 : index
    %589 = vector.load %arg8[%c6_276, %588, %c0_277] : memref<10x8x16xf32, #tpu.memory_space<vmem>>, vector<1x1x16xf32>
    %590 = vector.shape_cast %589 : vector<1x1x16xf32> to vector<1x16xf32>
    %591 = vector.shape_cast %587 : vector<1x16xf32> to vector<1x1x16xf32>
    tpu.vector_store %arg8[%c6_276, %588, %c0_277], %591 {strides = array<i32>} : memref<10x8x16xf32, #tpu.memory_space<vmem>>, vector<1x1x16xf32>,
    %592 = arith.index_cast %529 : i32 to index
    %c7_278 = arith.constant 7 : index
    %593 = memref.load %arg1[%592, %c7_278] : memref<16x10xi32, #tpu.memory_space<smem>>
    %594 = arith.index_cast %593 : i32 to index
    %c0_279 = arith.constant 0 : index
    %595 = vector.load %arg4[%594, %c0_279] : memref<40x16xf32, #tpu.memory_space<vmem>>, vector<1x16xf32>
    %c7_280 = arith.constant 7 : index
    %596 = arith.index_cast %c6_i32 : i32 to index
    %c0_281 = arith.constant 0 : index
    %597 = vector.load %arg8[%c7_280, %596, %c0_281] : memref<10x8x16xf32, #tpu.memory_space<vmem>>, vector<1x1x16xf32>
    %598 = vector.shape_cast %597 : vector<1x1x16xf32> to vector<1x16xf32>
    %599 = vector.shape_cast %595 : vector<1x16xf32> to vector<1x1x16xf32>
    tpu.vector_store %arg8[%c7_280, %596, %c0_281], %599 {strides = array<i32>} : memref<10x8x16xf32, #tpu.memory_space<vmem>>, vector<1x1x16xf32>,
    %600 = arith.index_cast %529 : i32 to index
    %c8_282 = arith.constant 8 : index
    %601 = memref.load %arg1[%600, %c8_282] : memref<16x10xi32, #tpu.memory_space<smem>>
    %602 = arith.index_cast %601 : i32 to index
    %c0_283 = arith.constant 0 : index
    %603 = vector.load %arg4[%602, %c0_283] : memref<40x16xf32, #tpu.memory_space<vmem>>, vector<1x16xf32>
    %c8_284 = arith.constant 8 : index
    %604 = arith.index_cast %c6_i32 : i32 to index
    %c0_285 = arith.constant 0 : index
    %605 = vector.load %arg8[%c8_284, %604, %c0_285] : memref<10x8x16xf32, #tpu.memory_space<vmem>>, vector<1x1x16xf32>
    %606 = vector.shape_cast %605 : vector<1x1x16xf32> to vector<1x16xf32>
    %607 = vector.shape_cast %603 : vector<1x16xf32> to vector<1x1x16xf32>
    tpu.vector_store %arg8[%c8_284, %604, %c0_285], %607 {strides = array<i32>} : memref<10x8x16xf32, #tpu.memory_space<vmem>>, vector<1x1x16xf32>,
    %608 = arith.index_cast %529 : i32 to index
    %c9_286 = arith.constant 9 : index
    %609 = memref.load %arg1[%608, %c9_286] : memref<16x10xi32, #tpu.memory_space<smem>>
    %610 = arith.index_cast %609 : i32 to index
    %c0_287 = arith.constant 0 : index
    %611 = vector.load %arg4[%610, %c0_287] : memref<40x16xf32, #tpu.memory_space<vmem>>, vector<1x16xf32>
    %c9_288 = arith.constant 9 : index
    %612 = arith.index_cast %c6_i32 : i32 to index
    %c0_289 = arith.constant 0 : index
    %613 = vector.load %arg8[%c9_288, %612, %c0_289] : memref<10x8x16xf32, #tpu.memory_space<vmem>>, vector<1x1x16xf32>
    %614 = vector.shape_cast %613 : vector<1x1x16xf32> to vector<1x16xf32>
    %615 = vector.shape_cast %611 : vector<1x16xf32> to vector<1x1x16xf32>
    tpu.vector_store %arg8[%c9_288, %612, %c0_289], %615 {strides = array<i32>} : memref<10x8x16xf32, #tpu.memory_space<vmem>>, vector<1x1x16xf32>,
    %c7_i32 = arith.constant 7 : i32
    %c8_i32_290 = arith.constant 8 : i32
    %616 = arith.muli %arg0, %c8_i32_290 : i32
    %617 = arith.addi %616, %c7_i32 : i32
    %618 = arith.index_cast %617 : i32 to index
    %619 = memref.load %arg2[%618] : memref<16xi32, #tpu.memory_space<smem>>
    %620 = arith.index_cast %619 : i32 to index
    %c0_291 = arith.constant 0 : index
    %621 = vector.load %arg4[%620, %c0_291] : memref<40x16xf32, #tpu.memory_space<vmem>>, vector<1x16xf32>
    %622 = arith.index_cast %c7_i32 : i32 to index
    %c0_292 = arith.constant 0 : index
    %623 = vector.load %arg7[%622, %c0_292] : memref<8x16xf32, #tpu.memory_space<vmem>>, vector<1x16xf32>
    tpu.vector_store %arg7[%622, %c0_292], %621 {strides = array<i32>} : memref<8x16xf32, #tpu.memory_space<vmem>>, vector<1x16xf32>,
    %624 = arith.index_cast %617 : i32 to index
    %c0_293 = arith.constant 0 : index
    %625 = memref.load %arg1[%624, %c0_293] : memref<16x10xi32, #tpu.memory_space<smem>>
    %626 = arith.index_cast %625 : i32 to index
    %c0_294 = arith.constant 0 : index
    %627 = vector.load %arg4[%626, %c0_294] : memref<40x16xf32, #tpu.memory_space<vmem>>, vector<1x16xf32>
    %c0_295 = arith.constant 0 : index
    %628 = arith.index_cast %c7_i32 : i32 to index
    %c0_296 = arith.constant 0 : index
    %629 = vector.load %arg8[%c0_295, %628, %c0_296] : memref<10x8x16xf32, #tpu.memory_space<vmem>>, vector<1x1x16xf32>
    %630 = vector.shape_cast %629 : vector<1x1x16xf32> to vector<1x16xf32>
    %631 = vector.shape_cast %627 : vector<1x16xf32> to vector<1x1x16xf32>
    tpu.vector_store %arg8[%c0_295, %628, %c0_296], %631 {strides = array<i32>} : memref<10x8x16xf32, #tpu.memory_space<vmem>>, vector<1x1x16xf32>,
    %632 = arith.index_cast %617 : i32 to index
    %c1_297 = arith.constant 1 : index
    %633 = memref.load %arg1[%632, %c1_297] : memref<16x10xi32, #tpu.memory_space<smem>>
    %634 = arith.index_cast %633 : i32 to index
    %c0_298 = arith.constant 0 : index
    %635 = vector.load %arg4[%634, %c0_298] : memref<40x16xf32, #tpu.memory_space<vmem>>, vector<1x16xf32>
    %c1_299 = arith.constant 1 : index
    %636 = arith.index_cast %c7_i32 : i32 to index
    %c0_300 = arith.constant 0 : index
    %637 = vector.load %arg8[%c1_299, %636, %c0_300] : memref<10x8x16xf32, #tpu.memory_space<vmem>>, vector<1x1x16xf32>
    %638 = vector.shape_cast %637 : vector<1x1x16xf32> to vector<1x16xf32>
    %639 = vector.shape_cast %635 : vector<1x16xf32> to vector<1x1x16xf32>
    tpu.vector_store %arg8[%c1_299, %636, %c0_300], %639 {strides = array<i32>} : memref<10x8x16xf32, #tpu.memory_space<vmem>>, vector<1x1x16xf32>,
    %640 = arith.index_cast %617 : i32 to index
    %c2_301 = arith.constant 2 : index
    %641 = memref.load %arg1[%640, %c2_301] : memref<16x10xi32, #tpu.memory_space<smem>>
    %642 = arith.index_cast %641 : i32 to index
    %c0_302 = arith.constant 0 : index
    %643 = vector.load %arg4[%642, %c0_302] : memref<40x16xf32, #tpu.memory_space<vmem>>, vector<1x16xf32>
    %c2_303 = arith.constant 2 : index
    %644 = arith.index_cast %c7_i32 : i32 to index
    %c0_304 = arith.constant 0 : index
    %645 = vector.load %arg8[%c2_303, %644, %c0_304] : memref<10x8x16xf32, #tpu.memory_space<vmem>>, vector<1x1x16xf32>
    %646 = vector.shape_cast %645 : vector<1x1x16xf32> to vector<1x16xf32>
    %647 = vector.shape_cast %643 : vector<1x16xf32> to vector<1x1x16xf32>
    tpu.vector_store %arg8[%c2_303, %644, %c0_304], %647 {strides = array<i32>} : memref<10x8x16xf32, #tpu.memory_space<vmem>>, vector<1x1x16xf32>,
    %648 = arith.index_cast %617 : i32 to index
    %c3_305 = arith.constant 3 : index
    %649 = memref.load %arg1[%648, %c3_305] : memref<16x10xi32, #tpu.memory_space<smem>>
    %650 = arith.index_cast %649 : i32 to index
    %c0_306 = arith.constant 0 : index
    %651 = vector.load %arg4[%650, %c0_306] : memref<40x16xf32, #tpu.memory_space<vmem>>, vector<1x16xf32>
    %c3_307 = arith.constant 3 : index
    %652 = arith.index_cast %c7_i32 : i32 to index
    %c0_308 = arith.constant 0 : index
    %653 = vector.load %arg8[%c3_307, %652, %c0_308] : memref<10x8x16xf32, #tpu.memory_space<vmem>>, vector<1x1x16xf32>
    %654 = vector.shape_cast %653 : vector<1x1x16xf32> to vector<1x16xf32>
    %655 = vector.shape_cast %651 : vector<1x16xf32> to vector<1x1x16xf32>
    tpu.vector_store %arg8[%c3_307, %652, %c0_308], %655 {strides = array<i32>} : memref<10x8x16xf32, #tpu.memory_space<vmem>>, vector<1x1x16xf32>,
    %656 = arith.index_cast %617 : i32 to index
    %c4_309 = arith.constant 4 : index
    %657 = memref.load %arg1[%656, %c4_309] : memref<16x10xi32, #tpu.memory_space<smem>>
    %658 = arith.index_cast %657 : i32 to index
    %c0_310 = arith.constant 0 : index
    %659 = vector.load %arg4[%658, %c0_310] : memref<40x16xf32, #tpu.memory_space<vmem>>, vector<1x16xf32>
    %c4_311 = arith.constant 4 : index
    %660 = arith.index_cast %c7_i32 : i32 to index
    %c0_312 = arith.constant 0 : index
    %661 = vector.load %arg8[%c4_311, %660, %c0_312] : memref<10x8x16xf32, #tpu.memory_space<vmem>>, vector<1x1x16xf32>
    %662 = vector.shape_cast %661 : vector<1x1x16xf32> to vector<1x16xf32>
    %663 = vector.shape_cast %659 : vector<1x16xf32> to vector<1x1x16xf32>
    tpu.vector_store %arg8[%c4_311, %660, %c0_312], %663 {strides = array<i32>} : memref<10x8x16xf32, #tpu.memory_space<vmem>>, vector<1x1x16xf32>,
    %664 = arith.index_cast %617 : i32 to index
    %c5_313 = arith.constant 5 : index
    %665 = memref.load %arg1[%664, %c5_313] : memref<16x10xi32, #tpu.memory_space<smem>>
    %666 = arith.index_cast %665 : i32 to index
    %c0_314 = arith.constant 0 : index
    %667 = vector.load %arg4[%666, %c0_314] : memref<40x16xf32, #tpu.memory_space<vmem>>, vector<1x16xf32>
    %c5_315 = arith.constant 5 : index
    %668 = arith.index_cast %c7_i32 : i32 to index
    %c0_316 = arith.constant 0 : index
    %669 = vector.load %arg8[%c5_315, %668, %c0_316] : memref<10x8x16xf32, #tpu.memory_space<vmem>>, vector<1x1x16xf32>
    %670 = vector.shape_cast %669 : vector<1x1x16xf32> to vector<1x16xf32>
    %671 = vector.shape_cast %667 : vector<1x16xf32> to vector<1x1x16xf32>
    tpu.vector_store %arg8[%c5_315, %668, %c0_316], %671 {strides = array<i32>} : memref<10x8x16xf32, #tpu.memory_space<vmem>>, vector<1x1x16xf32>,
    %672 = arith.index_cast %617 : i32 to index
    %c6_317 = arith.constant 6 : index
    %673 = memref.load %arg1[%672, %c6_317] : memref<16x10xi32, #tpu.memory_space<smem>>
    %674 = arith.index_cast %673 : i32 to index
    %c0_318 = arith.constant 0 : index
    %675 = vector.load %arg4[%674, %c0_318] : memref<40x16xf32, #tpu.memory_space<vmem>>, vector<1x16xf32>
    %c6_319 = arith.constant 6 : index
    %676 = arith.index_cast %c7_i32 : i32 to index
    %c0_320 = arith.constant 0 : index
    %677 = vector.load %arg8[%c6_319, %676, %c0_320] : memref<10x8x16xf32, #tpu.memory_space<vmem>>, vector<1x1x16xf32>
    %678 = vector.shape_cast %677 : vector<1x1x16xf32> to vector<1x16xf32>
    %679 = vector.shape_cast %675 : vector<1x16xf32> to vector<1x1x16xf32>
    tpu.vector_store %arg8[%c6_319, %676, %c0_320], %679 {strides = array<i32>} : memref<10x8x16xf32, #tpu.memory_space<vmem>>, vector<1x1x16xf32>,
    %680 = arith.index_cast %617 : i32 to index
    %c7_321 = arith.constant 7 : index
    %681 = memref.load %arg1[%680, %c7_321] : memref<16x10xi32, #tpu.memory_space<smem>>
    %682 = arith.index_cast %681 : i32 to index
    %c0_322 = arith.constant 0 : index
    %683 = vector.load %arg4[%682, %c0_322] : memref<40x16xf32, #tpu.memory_space<vmem>>, vector<1x16xf32>
    %c7_323 = arith.constant 7 : index
    %684 = arith.index_cast %c7_i32 : i32 to index
    %c0_324 = arith.constant 0 : index
    %685 = vector.load %arg8[%c7_323, %684, %c0_324] : memref<10x8x16xf32, #tpu.memory_space<vmem>>, vector<1x1x16xf32>
    %686 = vector.shape_cast %685 : vector<1x1x16xf32> to vector<1x16xf32>
    %687 = vector.shape_cast %683 : vector<1x16xf32> to vector<1x1x16xf32>
    tpu.vector_store %arg8[%c7_323, %684, %c0_324], %687 {strides = array<i32>} : memref<10x8x16xf32, #tpu.memory_space<vmem>>, vector<1x1x16xf32>,
    %688 = arith.index_cast %617 : i32 to index
    %c8_325 = arith.constant 8 : index
    %689 = memref.load %arg1[%688, %c8_325] : memref<16x10xi32, #tpu.memory_space<smem>>
    %690 = arith.index_cast %689 : i32 to index
    %c0_326 = arith.constant 0 : index
    %691 = vector.load %arg4[%690, %c0_326] : memref<40x16xf32, #tpu.memory_space<vmem>>, vector<1x16xf32>
    %c8_327 = arith.constant 8 : index
    %692 = arith.index_cast %c7_i32 : i32 to index
    %c0_328 = arith.constant 0 : index
    %693 = vector.load %arg8[%c8_327, %692, %c0_328] : memref<10x8x16xf32, #tpu.memory_space<vmem>>, vector<1x1x16xf32>
    %694 = vector.shape_cast %693 : vector<1x1x16xf32> to vector<1x16xf32>
    %695 = vector.shape_cast %691 : vector<1x16xf32> to vector<1x1x16xf32>
    tpu.vector_store %arg8[%c8_327, %692, %c0_328], %695 {strides = array<i32>} : memref<10x8x16xf32, #tpu.memory_space<vmem>>, vector<1x1x16xf32>,
    %696 = arith.index_cast %617 : i32 to index
    %c9_329 = arith.constant 9 : index
    %697 = memref.load %arg1[%696, %c9_329] : memref<16x10xi32, #tpu.memory_space<smem>>
    %698 = arith.index_cast %697 : i32 to index
    %c0_330 = arith.constant 0 : index
    %699 = vector.load %arg4[%698, %c0_330] : memref<40x16xf32, #tpu.memory_space<vmem>>, vector<1x16xf32>
    %c9_331 = arith.constant 9 : index
    %700 = arith.index_cast %c7_i32 : i32 to index
    %c0_332 = arith.constant 0 : index
    %701 = vector.load %arg8[%c9_331, %700, %c0_332] : memref<10x8x16xf32, #tpu.memory_space<vmem>>, vector<1x1x16xf32>
    %702 = vector.shape_cast %701 : vector<1x1x16xf32> to vector<1x16xf32>
    %703 = vector.shape_cast %699 : vector<1x16xf32> to vector<1x1x16xf32>
    tpu.vector_store %arg8[%c9_331, %700, %c0_332], %703 {strides = array<i32>} : memref<10x8x16xf32, #tpu.memory_space<vmem>>, vector<1x1x16xf32>,
    %c8_i32_333 = arith.constant 8 : i32
    %cst = arith.constant 0.000000e+00 : f32
    %704 = vector.broadcast %cst : f32 to vector<8x16xf32>
    %c0_334 = arith.constant 0 : index
    %c0_335 = arith.constant 0 : index
    %705 = vector.load %arg3[%c0_334, %c0_335] : memref<8x10xf32, #tpu.memory_space<vmem>>, vector<8x1xf32>
    %c0_336 = arith.constant 0 : index
    %c0_337 = arith.constant 0 : index
    %c0_338 = arith.constant 0 : index
    %706 = vector.load %arg8[%c0_336, %c0_337, %c0_338] : memref<10x8x16xf32, #tpu.memory_space<vmem>>, vector<1x8x16xf32>
    %707 = vector.shape_cast %706 : vector<1x8x16xf32> to vector<8x16xf32>
    %708 = vector.broadcast %705 : vector<8x1xf32> to vector<8x16xf32>
    %709 = arith.mulf %708, %707 : vector<8x16xf32>
    %710 = arith.addf %704, %709 : vector<8x16xf32>
    %c0_339 = arith.constant 0 : index
    %c1_340 = arith.constant 1 : index
    %711 = vector.load %arg3[%c0_339, %c1_340] : memref<8x10xf32, #tpu.memory_space<vmem>>, vector<8x1xf32>
    %c1_341 = arith.constant 1 : index
    %c0_342 = arith.constant 0 : index
    %c0_343 = arith.constant 0 : index
    %712 = vector.load %arg8[%c1_341, %c0_342, %c0_343] : memref<10x8x16xf32, #tpu.memory_space<vmem>>, vector<1x8x16xf32>
    %713 = vector.shape_cast %712 : vector<1x8x16xf32> to vector<8x16xf32>
    %714 = vector.broadcast %711 : vector<8x1xf32> to vector<8x16xf32>
    %715 = arith.mulf %714, %713 : vector<8x16xf32>
    %716 = arith.addf %710, %715 : vector<8x16xf32>
    %c0_344 = arith.constant 0 : index
    %c2_345 = arith.constant 2 : index
    %717 = vector.load %arg3[%c0_344, %c2_345] : memref<8x10xf32, #tpu.memory_space<vmem>>, vector<8x1xf32>
    %c2_346 = arith.constant 2 : index
    %c0_347 = arith.constant 0 : index
    %c0_348 = arith.constant 0 : index
    %718 = vector.load %arg8[%c2_346, %c0_347, %c0_348] : memref<10x8x16xf32, #tpu.memory_space<vmem>>, vector<1x8x16xf32>
    %719 = vector.shape_cast %718 : vector<1x8x16xf32> to vector<8x16xf32>
    %720 = vector.broadcast %717 : vector<8x1xf32> to vector<8x16xf32>
    %721 = arith.mulf %720, %719 : vector<8x16xf32>
    %722 = arith.addf %716, %721 : vector<8x16xf32>
    %c0_349 = arith.constant 0 : index
    %c3_350 = arith.constant 3 : index
    %723 = vector.load %arg3[%c0_349, %c3_350] : memref<8x10xf32, #tpu.memory_space<vmem>>, vector<8x1xf32>
    %c3_351 = arith.constant 3 : index
    %c0_352 = arith.constant 0 : index
    %c0_353 = arith.constant 0 : index
    %724 = vector.load %arg8[%c3_351, %c0_352, %c0_353] : memref<10x8x16xf32, #tpu.memory_space<vmem>>, vector<1x8x16xf32>
    %725 = vector.shape_cast %724 : vector<1x8x16xf32> to vector<8x16xf32>
    %726 = vector.broadcast %723 : vector<8x1xf32> to vector<8x16xf32>
    %727 = arith.mulf %726, %725 : vector<8x16xf32>
    %728 = arith.addf %722, %727 : vector<8x16xf32>
    %c0_354 = arith.constant 0 : index
    %c4_355 = arith.constant 4 : index
    %729 = vector.load %arg3[%c0_354, %c4_355] : memref<8x10xf32, #tpu.memory_space<vmem>>, vector<8x1xf32>
    %c4_356 = arith.constant 4 : index
    %c0_357 = arith.constant 0 : index
    %c0_358 = arith.constant 0 : index
    %730 = vector.load %arg8[%c4_356, %c0_357, %c0_358] : memref<10x8x16xf32, #tpu.memory_space<vmem>>, vector<1x8x16xf32>
    %731 = vector.shape_cast %730 : vector<1x8x16xf32> to vector<8x16xf32>
    %732 = vector.broadcast %729 : vector<8x1xf32> to vector<8x16xf32>
    %733 = arith.mulf %732, %731 : vector<8x16xf32>
    %734 = arith.addf %728, %733 : vector<8x16xf32>
    %c0_359 = arith.constant 0 : index
    %c5_360 = arith.constant 5 : index
    %735 = vector.load %arg3[%c0_359, %c5_360] : memref<8x10xf32, #tpu.memory_space<vmem>>, vector<8x1xf32>
    %c5_361 = arith.constant 5 : index
    %c0_362 = arith.constant 0 : index
    %c0_363 = arith.constant 0 : index
    %736 = vector.load %arg8[%c5_361, %c0_362, %c0_363] : memref<10x8x16xf32, #tpu.memory_space<vmem>>, vector<1x8x16xf32>
    %737 = vector.shape_cast %736 : vector<1x8x16xf32> to vector<8x16xf32>
    %738 = vector.broadcast %735 : vector<8x1xf32> to vector<8x16xf32>
    %739 = arith.mulf %738, %737 : vector<8x16xf32>
    %740 = arith.addf %734, %739 : vector<8x16xf32>
    %c0_364 = arith.constant 0 : index
    %c6_365 = arith.constant 6 : index
    %741 = vector.load %arg3[%c0_364, %c6_365] : memref<8x10xf32, #tpu.memory_space<vmem>>, vector<8x1xf32>
    %c6_366 = arith.constant 6 : index
    %c0_367 = arith.constant 0 : index
    %c0_368 = arith.constant 0 : index
    %742 = vector.load %arg8[%c6_366, %c0_367, %c0_368] : memref<10x8x16xf32, #tpu.memory_space<vmem>>, vector<1x8x16xf32>
    %743 = vector.shape_cast %742 : vector<1x8x16xf32> to vector<8x16xf32>
    %744 = vector.broadcast %741 : vector<8x1xf32> to vector<8x16xf32>
    %745 = arith.mulf %744, %743 : vector<8x16xf32>
    %746 = arith.addf %740, %745 : vector<8x16xf32>
    %c0_369 = arith.constant 0 : index
    %c7_370 = arith.constant 7 : index
    %747 = vector.load %arg3[%c0_369, %c7_370] : memref<8x10xf32, #tpu.memory_space<vmem>>, vector<8x1xf32>
    %c7_371 = arith.constant 7 : index
    %c0_372 = arith.constant 0 : index
    %c0_373 = arith.constant 0 : index
    %748 = vector.load %arg8[%c7_371, %c0_372, %c0_373] : memref<10x8x16xf32, #tpu.memory_space<vmem>>, vector<1x8x16xf32>
    %749 = vector.shape_cast %748 : vector<1x8x16xf32> to vector<8x16xf32>
    %750 = vector.broadcast %747 : vector<8x1xf32> to vector<8x16xf32>
    %751 = arith.mulf %750, %749 : vector<8x16xf32>
    %752 = arith.addf %746, %751 : vector<8x16xf32>
    %c0_374 = arith.constant 0 : index
    %c8_375 = arith.constant 8 : index
    %753 = vector.load %arg3[%c0_374, %c8_375] : memref<8x10xf32, #tpu.memory_space<vmem>>, vector<8x1xf32>
    %c8_376 = arith.constant 8 : index
    %c0_377 = arith.constant 0 : index
    %c0_378 = arith.constant 0 : index
    %754 = vector.load %arg8[%c8_376, %c0_377, %c0_378] : memref<10x8x16xf32, #tpu.memory_space<vmem>>, vector<1x8x16xf32>
    %755 = vector.shape_cast %754 : vector<1x8x16xf32> to vector<8x16xf32>
    %756 = vector.broadcast %753 : vector<8x1xf32> to vector<8x16xf32>
    %757 = arith.mulf %756, %755 : vector<8x16xf32>
    %758 = arith.addf %752, %757 : vector<8x16xf32>
    %c0_379 = arith.constant 0 : index
    %c9_380 = arith.constant 9 : index
    %759 = vector.load %arg3[%c0_379, %c9_380] : memref<8x10xf32, #tpu.memory_space<vmem>>, vector<8x1xf32>
    %c9_381 = arith.constant 9 : index
    %c0_382 = arith.constant 0 : index
    %c0_383 = arith.constant 0 : index
    %760 = vector.load %arg8[%c9_381, %c0_382, %c0_383] : memref<10x8x16xf32, #tpu.memory_space<vmem>>, vector<1x8x16xf32>
    %761 = vector.shape_cast %760 : vector<1x8x16xf32> to vector<8x16xf32>
    %762 = vector.broadcast %759 : vector<8x1xf32> to vector<8x16xf32>
    %763 = arith.mulf %762, %761 : vector<8x16xf32>
    %764 = arith.addf %758, %763 : vector<8x16xf32>
    %c0_384 = arith.constant 0 : index
    %c0_385 = arith.constant 0 : index
    %765 = vector.load %arg7[%c0_384, %c0_385] : memref<8x16xf32, #tpu.memory_space<vmem>>, vector<8x16xf32>
    %766 = tpu.concatenate %765, %764 in 1 : vector<8x16xf32>, vector<8x16xf32> -> vector<8x32xf32>
    %c0_386 = arith.constant 0 : index
    %c0_387 = arith.constant 0 : index
    %767 = vector.load %arg5[%c0_386, %c0_387] : memref<32x128xf32, #tpu.memory_space<vmem>>, vector<32x128xf32>
    %cst_388 = arith.constant dense<0.000000e+00> : vector<8x128xf32>
    %768 = tpu.matmul %766, %767, %cst_388 {dimension_numbers = #tpu.dot_dimension_numbers<[1], [0], [0], [1], [0, 0, 1, 1], [], []>} : vector<8x32xf32>, vector<32x128xf32>, vector<8x128xf32> -> vector<8x128xf32>
    %cst_389 = arith.constant 0.000000e+00 : f32
    %769 = vector.broadcast %cst_389 : f32 to vector<8x128xf32>
    %770 = arith.maximumf %768, %769 : vector<8x128xf32>
    %c0_390 = arith.constant 0 : index
    %c0_391 = arith.constant 0 : index
    %771 = vector.load %arg6[%c0_390, %c0_391] : memref<8x128xf32, #tpu.memory_space<vmem>>, vector<8x128xf32>
    tpu.vector_store %arg6[%c0_390, %c0_391], %770 {strides = array<i32>} : memref<8x128xf32, #tpu.memory_space<vmem>>, vector<8x128xf32>,
    return
  }
  func.func @transform_0(%arg0: i32, %arg1: memref<16x10xi32, #tpu.memory_space<smem>>, %arg2: memref<16xi32, #tpu.memory_space<smem>>) -> (i32, i32) {
    %c0_i32 = arith.constant 0 : i32
    %c0_i32_0 = arith.constant 0 : i32
    return %arg0, %c0_i32 : i32, i32
  }
  func.func @transform_1(%arg0: i32, %arg1: memref<16x10xi32, #tpu.memory_space<smem>>, %arg2: memref<16xi32, #tpu.memory_space<smem>>) -> (i32, i32) {
    %c0_i32 = arith.constant 0 : i32
    %c0_i32_0 = arith.constant 0 : i32
    %c0_i32_1 = arith.constant 0 : i32
    return %c0_i32, %c0_i32_0 : i32, i32
  }
  func.func @transform_2(%arg0: i32, %arg1: memref<16x10xi32, #tpu.memory_space<smem>>, %arg2: memref<16xi32, #tpu.memory_space<smem>>) -> (i32, i32) {
    %c0_i32 = arith.constant 0 : i32
    %c0_i32_0 = arith.constant 0 : i32
    %c0_i32_1 = arith.constant 0 : i32
    return %c0_i32, %c0_i32_0 : i32, i32
  }
  func.func @transform_3(%arg0: i32, %arg1: memref<16x10xi32, #tpu.memory_space<smem>>, %arg2: memref<16xi32, #tpu.memory_space<smem>>) -> (i32, i32) {
    %c0_i32 = arith.constant 0 : i32
    %c0_i32_0 = arith.constant 0 : i32
    return %arg0, %c0_i32 : i32, i32
  }
}

</mosaic_0001>

<llo_original>
// kernel: tpu_custom_call.1
$region0: #{tpu_custom_call.1}
  #allocation0 [shape = 'u32[]', space=smem, size = 0x4, offset = 0x4, fixed_abs, tag = 'smem constant byte address 0x4 - core index']
  #allocation1 [shape = 'u32[72,128]{1,0:T(1,128)}', space=vmem, size = 0x9000, scoped, tag = 'internal scratch']
  #allocation2 [shape = 'f32[8,16]{1,0:T(8,128)}', space=vmem, size = 0x1000, scoped, tag = 'scratch operand']
  #allocation3 [shape = 'f32[10,8,16]{2,1,0:T(8,128)}', space=vmem, size = 0xa000, scoped, tag = 'scratch operand']
  #allocation4 [shape = 's32[1]{0}', space=sflag, size = 0x4, scoped, tag = 'scoped memory for tpu_custom_call.1']
  #allocation5 [shape = 'u8[8192]{0}', space=smem, size = 0x2000, scoped, tag = 'prefetched SMEM operand 0']
  #allocation6 [shape = 'u8[512]{0}', space=smem, size = 0x200, scoped, tag = 'prefetched SMEM operand 1']
  %s0 = inlined_call_operand.vmem [shape: s32[16,10], index: 0, kind: input, shape index: {}]
  %s1 = inlined_call_operand.vmem [shape: s32[16], index: 1, kind: input, shape index: {}]
  %s2 = inlined_call_operand.hbm [shape: f32[16,10], index: 2, kind: input, shape index: {}]
  %s3 = inlined_call_operand.vmem [shape: f32[40,16], index: 3, kind: input, shape index: {}]
  %s4 = inlined_call_operand.vmem [shape: f32[32,128], index: 4, kind: input, shape index: {}]
  %s5 = inlined_call_operand.hbm [shape: f32[16,128], index: 5, kind: output, shape index: {}]
  %s6 = sld [smem:[#allocation0]]
  $region49: #{tpu_custom_call.1} parent=0
    _
  %s8 = ssub.s32 1, %s6
  %s9 = scalar_select 0, %s8, %s6
  %s11 = sshll.u32 %s0, 4
  %s12 = int_to_ptr.vmem [resolvable:$true] %s11
  %14 = dma.vmem_to_smem %s12, 256, [#allocation5], [#allocation4]
  %s16 = sshll.u32 %s1, 4
  %s17 = int_to_ptr.vmem [resolvable:$true] %s16
  %19 = dma.vmem_to_smem %s17, 16, [#allocation6], [#allocation4]
  %21 = dma.done [#allocation4], 272
  %22 = sfence
  $region1: #{tpu_custom_call.1} parent=0
    #allocation7 [shape = 'u8[8192]{0}', space=vmem, size = 0x2000, scoped, tag = 'input window, operand 2']
    #allocation8 [shape = 's32[2]{0}', space=sflag, size = 0x8, scoped, tag = 'scoped memory for tpu_custom_call.1']
    #allocation9 [shape = 's32[2]{0}', space=sflag, size = 0x8, scoped, tag = 'scoped memory for tpu_custom_call.1']
    #allocation10 [shape = 'u8[8192]{0}', space=vmem, size = 0x2000, scoped, tag = 'output window, operand 0']
    %23 = vsyncpa [#allocation8], 0
    %s24 = scalar_lea.sflag [#allocation8], 1
    %25 = vsyncpa %s24, 0
    %26 = vsyncpa [#allocation9], 0
    %s27 = scalar_lea.sflag [#allocation9], 1
    %28 = vsyncpa %s27, 0
    loop: start=0, step=1, limit=4
    $region2: #{tpu_custom_call.1} parent=1 // loop_pre_header
      _
    $region3: #{tpu_custom_call.1} parent=1 // loop_header
      %s30 = sphi 0, %s34
      %p31 = scmp.ge.s32.totalorder %s30, 4
      %s40 = sphi 0, %s42
      %s43 = sphi 0, %s40
      %s44 = sphi 0, %s43
      %s60 = sphi 0, %s44
      %s64 = sphi 0, %s64
      %s66 = sphi 0, %s64
      %s67 = sphi 0, %s66
      %s81 = sphi 0, %s67
      %s85 = sphi 0, %s85
      %s87 = sphi 0, %s85
      %s88 = sphi 0, %s87
      %s102 = sphi 0, %s88
      %s108 = sphi 0, %s110
      %s111 = sphi 0, %s108
      %s112 = sphi 0, %s111
      %s128 = sphi 0, %s112
    $region4: #{tpu_custom_call.1} parent=1 // loop_header_branch
      %33 = sbr.rel (%p31) target = $region8
    $region5: #{tpu_custom_call.1} parent=1 // loop_body
      %s35 = ssub.s32 %s30, 1
      %s36 = ssub.s32 %s30, 2
      %s37 = sadd.s32 %s30, 1
      %s38 = ssub.s32 %s30, %s37
      %p39 = scmp.eq.s32.totalorder %s38, 0
      %s41 = sadd.s32 %s40, 1
      %s42 = scalar_select %p39, %s40, %s41
      %p45 = pneg %p39
      %p46 = scmp.eq.s32.totalorder %s30, 1
      %p47 = por %p45, %p46
      %p48 = scmp.ne.s32.totalorder %s40, %s43
      %p49 = scmp.eq.s32.totalorder %s30, 0
      %p50 = por %p48, %p49
      %p51 = scmp.ne.s32.totalorder %s40, %s43
      %p52 = scmp.eq.s32.totalorder %s35, 1
      %p53 = por %p51, %p52
      %p54 = scmp.ne.s32.totalorder %s43, %s44
      %p55 = scmp.eq.s32.totalorder %s35, 0
      %p56 = por %p54, %p55
      %p57 = scmp.ne.s32.totalorder %s43, %s44
      %p58 = scmp.eq.s32.totalorder %s36, 1
      %p59 = por %p57, %p58
      %p61 = scmp.ne.s32.totalorder %s44, %s60
      %p62 = scmp.eq.s32.totalorder %s36, 0
      %p63 = por %p61, %p62
      %s65 = sadd.s32 %s64, 1
      %p68 = scmp.eq.s32.totalorder %s30, 1
      %p69 = scmp.ne.s32.totalorder %s64, %s66
      %p70 = scmp.eq.s32.totalorder %s30, 0
      %p71 = por %p69, %p70
      %p72 = scmp.ne.s32.totalorder %s64, %s66
      %p73 = scmp.eq.s32.totalorder %s35, 1
      %p74 = por %p72, %p73
      %p75 = scmp.ne.s32.totalorder %s66, %s67
      %p76 = scmp.eq.s32.totalorder %s35, 0
      %p77 = por %p75, %p76
      %p78 = scmp.ne.s32.totalorder %s66, %s67
      %p79 = scmp.eq.s32.totalorder %s36, 1
      %p80 = por %p78, %p79
      %p82 = scmp.ne.s32.totalorder %s67, %s81
      %p83 = scmp.eq.s32.totalorder %s36, 0
      %p84 = por %p82, %p83
      %s86 = sadd.s32 %s85, 1
      %p89 = scmp.eq.s32.totalorder %s30, 1
      %p90 = scmp.ne.s32.totalorder %s85, %s87
      %p91 = scmp.eq.s32.totalorder %s30, 0
      %p92 = por %p90, %p91
      %p93 = scmp.ne.s32.totalorder %s85, %s87
      %p94 = scmp.eq.s32.totalorder %s35, 1
      %p95 = por %p93, %p94
      %p96 = scmp.ne.s32.totalorder %s87, %s88
      %p97 = scmp.eq.s32.totalorder %s35, 0
      %p98 = por %p96, %p97
      %p99 = scmp.ne.s32.totalorder %s87, %s88
      %p100 = scmp.eq.s32.totalorder %s36, 1
      %p101 = por %p99, %p100
      %p103 = scmp.ne.s32.totalorder %s88, %s102
      %p104 = scmp.eq.s32.totalorder %s36, 0
      %p105 = por %p103, %p104
      %s106 = ssub.s32 %s30, %s37
      %p107 = scmp.eq.s32.totalorder %s106, 0
      %s109 = sadd.s32 %s108, 1
      %s110 = scalar_select %p107, %s108, %s109
      %p113 = pneg %p107
      %p114 = scmp.eq.s32.totalorder %s30, 1
      %p115 = por %p113, %p114
      %p116 = scmp.ne.s32.totalorder %s108, %s111
      %p117 = scmp.eq.s32.totalorder %s30, 0
      %p118 = por %p116, %p117
      %p119 = scmp.ne.s32.totalorder %s108, %s111
      %p120 = scmp.eq.s32.totalorder %s35, 1
      %p121 = por %p119, %p120
      %p122 = scmp.ne.s32.totalorder %s111, %s112
      %p123 = scmp.eq.s32.totalorder %s35, 0
      %p124 = por %p122, %p123
      %p125 = scmp.ne.s32.totalorder %s111, %s112
      %p126 = scmp.eq.s32.totalorder %s36, 1
      %p127 = por %p125, %p126
      %p129 = scmp.ne.s32.totalorder %s112, %s128
      %p130 = scmp.eq.s32.totalorder %s36, 0
      %p131 = por %p129, %p130
      %p132 = scmp.le.s32.totalorder 1, %s30
      %p133 = scmp.lt.s32.totalorder %s30, 3
      %p134 = pnand %p132, %p133
      %p135 = pneg %p134
      // Predicated region
      $region9: #{tpu_custom_call.1} parent=5 // pred_check
        _
      $region10: #{tpu_custom_call.1} parent=5 // pred_check_branch
        %137 = sbr.rel (%p134) target = $region12
      $region11: #{tpu_custom_call.1} parent=5 // pred_region
        %s138 = ssub.s32 %s30, 1
        // Predicated region
        $region13: #{tpu_custom_call.1} parent=11 // pred_check
          %p139 = pneg %p77
        $region14: #{tpu_custom_call.1} parent=11 // pred_check_branch
          %141 = sbr.rel (%p139) target = $region16
        $region15: #{tpu_custom_call.1} parent=11 // pred_region
          _
        $region16: #{tpu_custom_call.1} parent=11 // pred_fallthru
          _
        // Predicated region
        $region17: #{tpu_custom_call.1} parent=11 // pred_check
          %p142 = pneg %p98
        $region18: #{tpu_custom_call.1} parent=11 // pred_check_branch
          %144 = sbr.rel (%p142) target = $region20
        $region19: #{tpu_custom_call.1} parent=11 // pred_region
          _
        $region20: #{tpu_custom_call.1} parent=11 // pred_fallthru
          _
      $region12: #{tpu_custom_call.1} parent=5 // pred_fallthru
        _
      %p145 = scmp.lt.s32.totalorder %s30, 2
      // Predicated region
      $region21: #{tpu_custom_call.1} parent=5 // pred_check
        %p146 = pneg %p145
      $region22: #{tpu_custom_call.1} parent=5 // pred_check_branch
        %148 = sbr.rel (%p146) target = $region24
      $region23: #{tpu_custom_call.1} parent=5 // pred_region
        // Predicated region
        $region25: #{tpu_custom_call.1} parent=23 // pred_check
          %p149 = pneg %p50
        $region26: #{tpu_custom_call.1} parent=23 // pred_check_branch
          %151 = sbr.rel (%p149) target = $region28
        $region27: #{tpu_custom_call.1} parent=23 // pred_region
          %s152 = sand.u32 %s40, 1
          %s153 = scalar_lea.sflag [#allocation8], %s152
          %s154 = sand.u32 %s40, 1
          %s155 = smul.addr %s154, 8
          %s156 = scalar_lea.vmem [#allocation7], %s155
          %158 = vsyncadd %s153, 0
          %s159 = smul.addr %s30, 8
          %s160 = scalar_lea.hbm %s2, %s159
          %s162 = sshll.u32 %s160, 4
          %s163 = int_to_ptr.hbm [resolvable:$true] %s162
          %s164 = sshll.u32 %s156, 4
          %s165 = int_to_ptr.vmem [resolvable:$true] %s164
          %167 = dma.hbm_to_vmem [thread:$0]  %s163, 128, %s165, %s153
        $region28: #{tpu_custom_call.1} parent=23 // pred_fallthru
          _
      $region24: #{tpu_custom_call.1} parent=5 // pred_fallthru
        _
      %p168 = scmp.le.s32.totalorder 1, %s30
      %p169 = scmp.lt.s32.totalorder %s30, 3
      %p170 = pnand %p168, %p169
      %p171 = pneg %p170
      // Predicated region
      $region29: #{tpu_custom_call.1} parent=5 // pred_check
        _
      $region30: #{tpu_custom_call.1} parent=5 // pred_check_branch
        %173 = sbr.rel (%p170) target = $region32
      $region31: #{tpu_custom_call.1} parent=5 // pred_region
        %s174 = ssub.s32 %s30, 1
        %s175 = sand.u32 %s43, 1
        %s176 = scalar_lea.sflag [#allocation8], %s175
        %s177 = sand.u32 %s43, 1
        %s178 = smul.addr %s177, 8
        %s179 = scalar_lea.vmem [#allocation7], %s178
        // Predicated region
        $region33: #{tpu_custom_call.1} parent=31 // pred_check
          %p180 = pneg %p56
        $region34: #{tpu_custom_call.1} parent=31 // pred_check_branch
          %182 = sbr.rel (%p180) target = $region36
        $region35: #{tpu_custom_call.1} parent=31 // pred_region
          %184 = dma.done %s176, 128
        $region36: #{tpu_custom_call.1} parent=31 // pred_fallthru
          _
        %s185 = sand.u32 %s43, 1
        %s186 = scalar_lea.sflag [#allocation8], %s185
        %s187 = sand.u32 %s43, 1
        %s188 = smul.addr %s187, 8
        %s189 = scalar_lea.vmem [#allocation7], %s188
        %p190 = pneg %p56
        %p191 = pneg %p53
        %p192 = pneg %p77
        %p193 = pneg %p74
        %p194 = pneg %p98
        %p195 = pneg %p95
        %p196 = pneg %p124
        %p197 = pneg %p121
        %s198 = sand.u32 %s111, 1
        %s199 = scalar_lea.sflag [#allocation9], %s198
        %s200 = sand.u32 %s111, 1
        %s201 = smul.addr %s200, 8
        %s202 = scalar_lea.vmem [#allocation10], %s201
        %s203 = smul.u32 %s35, 8
        %s204 = sld [smem:[#allocation6 + %s203]]
        %s205 = scalar_lea.vmem %s3, %s204
        %v206 = vld [vmem:[%s205] sm:$0x1]
        %vm207 = vcmask 122880
        %208 = vst.msk [vmem:[#allocation2] sm:$0x1] %vm207, %v206
        %s209 = smul.u32 %s203, 128
        %s210 = sld [smem:[#allocation5 + %s209]]
        %s211 = scalar_lea.vmem %s3, %s210
        %v212 = vld [vmem:[%s211] sm:$0x1]
        %213 = vst.msk [vmem:[#allocation3] sm:$0x1] %vm207, %v212
        %s214 = sadd.s32 %s209, 1
        %s215 = sld [smem:[#allocation5 + %s214]]
        %s216 = scalar_lea.vmem %s3, %s215
        %v217 = vld [vmem:[%s216] sm:$0x1]
        %s218 = scalar_lea.vmem [#allocation3], 8
        %219 = vst.msk [vmem:[%s218] sm:$0x1] %vm207, %v217
        %s220 = sadd.s32 %s209, 2
        %s221 = sld [smem:[#allocation5 + %s220]]
        %s222 = scalar_lea.vmem %s3, %s221
        %v223 = vld [vmem:[%s222] sm:$0x1]
        %s224 = scalar_lea.vmem [#allocation3], 16
        %225 = vst.msk [vmem:[%s224] sm:$0x1] %vm207, %v223
        %s226 = sadd.s32 %s209, 3
        %s227 = sld [smem:[#allocation5 + %s226]]
        %s228 = scalar_lea.vmem %s3, %s227
        %v229 = vld [vmem:[%s228] sm:$0x1]
        %s230 = scalar_lea.vmem [#allocation3], 24
        %231 = vst.msk [vmem:[%s230] sm:$0x1] %vm207, %v229
        %s232 = sadd.s32 %s209, 4
        %s233 = sld [smem:[#allocation5 + %s232]]
        %s234 = scalar_lea.vmem %s3, %s233
        %v235 = vld [vmem:[%s234] sm:$0x1]
        %s236 = scalar_lea.vmem [#allocation3], 32
        %237 = vst.msk [vmem:[%s236] sm:$0x1] %vm207, %v235
        %s238 = sadd.s32 %s209, 5
        %s239 = sld [smem:[#allocation5 + %s238]]
        %s240 = scalar_lea.vmem %s3, %s239
        %v241 = vld [vmem:[%s240] sm:$0x1]
        %s242 = scalar_lea.vmem [#allocation3], 40
        %243 = vst.msk [vmem:[%s242] sm:$0x1] %vm207, %v241
        %s244 = sadd.s32 %s209, 6
        %s245 = sld [smem:[#allocation5 + %s244]]
        %s246 = scalar_lea.vmem %s3, %s245
        %v247 = vld [vmem:[%s246] sm:$0x1]
        %s248 = scalar_lea.vmem [#allocation3], 48
        %249 = vst.msk [vmem:[%s248] sm:$0x1] %vm207, %v247
        %s250 = sadd.s32 %s209, 7
        %s251 = sld [smem:[#allocation5 + %s250]]
        %s252 = scalar_lea.vmem %s3, %s251
        %v253 = vld [vmem:[%s252] sm:$0x1]
        %s254 = scalar_lea.vmem [#allocation3], 56
        %255 = vst.msk [vmem:[%s254] sm:$0x1] %vm207, %v253
        %s256 = sadd.s32 %s209, 8
        %s257 = sld [smem:[#allocation5 + %s256]]
        %s258 = scalar_lea.vmem %s3, %s257
        %v259 = vld [vmem:[%s258] sm:$0x1]
        %s260 = scalar_lea.vmem [#allocation3], 64
        %261 = vst.msk [vmem:[%s260] sm:$0x1] %vm207, %v259
        %s262 = sadd.s32 %s209, 9
        %s263 = sld [smem:[#allocation5 + %s262]]
        %s264 = scalar_lea.vmem %s3, %s263
        %v265 = vld [vmem:[%s264] sm:$0x1]
        %s266 = scalar_lea.vmem [#allocation3], 72
        %267 = vst.msk [vmem:[%s266] sm:$0x1] %vm207, %v265
        %s268 = sadd.s32 %s203, 1
        %s269 = sld [smem:[#allocation6 + %s268]]
        %s270 = scalar_lea.vmem %s3, %s269
        %v271 = vld [vmem:[%s270] sm:$0x1]
        %272 = vst.msk [vmem:[#allocation2 + $0x1] sm:$0x1] %vm207, %v271
        %s273 = smul.u32 %s268, 128
        %s274 = sld [smem:[#allocation5 + %s273]]
        %s275 = scalar_lea.vmem %s3, %s274
        %v276 = vld [vmem:[%s275] sm:$0x1]
        %277 = vst.msk [vmem:[#allocation3 + $0x1] sm:$0x1] %vm207, %v276
        %s278 = sadd.s32 %s273, 1
        %s279 = sld [smem:[#allocation5 + %s278]]
        %s280 = scalar_lea.vmem %s3, %s279
        %v281 = vld [vmem:[%s280] sm:$0x1]
        %282 = vst.msk [vmem:[%s218 + $0x1] sm:$0x1] %vm207, %v281
        %s283 = sadd.s32 %s273, 2
        %s284 = sld [smem:[#allocation5 + %s283]]
        %s285 = scalar_lea.vmem %s3, %s284
        %v286 = vld [vmem:[%s285] sm:$0x1]
        %287 = vst.msk [vmem:[%s224 + $0x1] sm:$0x1] %vm207, %v286
        %s288 = sadd.s32 %s273, 3
        %s289 = sld [smem:[#allocation5 + %s288]]
        %s290 = scalar_lea.vmem %s3, %s289
        %v291 = vld [vmem:[%s290] sm:$0x1]
        %292 = vst.msk [vmem:[%s230 + $0x1] sm:$0x1] %vm207, %v291
        %s293 = sadd.s32 %s273, 4
        %s294 = sld [smem:[#allocation5 + %s293]]
        %s295 = scalar_lea.vmem %s3, %s294
        %v296 = vld [vmem:[%s295] sm:$0x1]
        %297 = vst.msk [vmem:[%s236 + $0x1] sm:$0x1] %vm207, %v296
        %s298 = sadd.s32 %s273, 5
        %s299 = sld [smem:[#allocation5 + %s298]]
        %s300 = scalar_lea.vmem %s3, %s299
        %v301 = vld [vmem:[%s300] sm:$0x1]
        %302 = vst.msk [vmem:[%s242 + $0x1] sm:$0x1] %vm207, %v301
        %s303 = sadd.s32 %s273, 6
        %s304 = sld [smem:[#allocation5 + %s303]]
        %s305 = scalar_lea.vmem %s3, %s304
        %v306 = vld [vmem:[%s305] sm:$0x1]
        %307 = vst.msk [vmem:[%s248 + $0x1] sm:$0x1] %vm207, %v306
        %s308 = sadd.s32 %s273, 7
        %s309 = sld [smem:[#allocation5 + %s308]]
        %s310 = scalar_lea.vmem %s3, %s309
        %v311 = vld [vmem:[%s310] sm:$0x1]
        %312 = vst.msk [vmem:[%s254 + $0x1] sm:$0x1] %vm207, %v311
        %s313 = sadd.s32 %s273, 8
        %s314 = sld [smem:[#allocation5 + %s313]]
        %s315 = scalar_lea.vmem %s3, %s314
        %v316 = vld [vmem:[%s315] sm:$0x1]
        %317 = vst.msk [vmem:[%s260 + $0x1] sm:$0x1] %vm207, %v316
        %s318 = sadd.s32 %s273, 9
        %s319 = sld [smem:[#allocation5 + %s318]]
        %s320 = scalar_lea.vmem %s3, %s319
        %v321 = vld [vmem:[%s320] sm:$0x1]
        %322 = vst.msk [vmem:[%s266 + $0x1] sm:$0x1] %vm207, %v321
        %s323 = sadd.s32 %s203, 2
        %s324 = sld [smem:[#allocation6 + %s323]]
        %s325 = scalar_lea.vmem %s3, %s324
        %v326 = vld [vmem:[%s325] sm:$0x1]
        %327 = vst.msk [vmem:[#allocation2 + $0x2] sm:$0x1] %vm207, %v326
        %s328 = smul.u32 %s323, 128
        %s329 = sld [smem:[#allocation5 + %s328]]
        %s330 = scalar_lea.vmem %s3, %s329
        %v331 = vld [vmem:[%s330] sm:$0x1]
        %332 = vst.msk [vmem:[#allocation3 + $0x2] sm:$0x1] %vm207, %v331
        %s333 = sadd.s32 %s328, 1
        %s334 = sld [smem:[#allocation5 + %s333]]
        %s335 = scalar_lea.vmem %s3, %s334
        %v336 = vld [vmem:[%s335] sm:$0x1]
        %337 = vst.msk [vmem:[%s218 + $0x2] sm:$0x1] %vm207, %v336
        %s338 = sadd.s32 %s328, 2
        %s339 = sld [smem:[#allocation5 + %s338]]
        %s340 = scalar_lea.vmem %s3, %s339
        %v341 = vld [vmem:[%s340] sm:$0x1]
        %342 = vst.msk [vmem:[%s224 + $0x2] sm:$0x1] %vm207, %v341
        %s343 = sadd.s32 %s328, 3
        %s344 = sld [smem:[#allocation5 + %s343]]
        %s345 = scalar_lea.vmem %s3, %s344
        %v346 = vld [vmem:[%s345] sm:$0x1]
        %347 = vst.msk [vmem:[%s230 + $0x2] sm:$0x1] %vm207, %v346
        %s348 = sadd.s32 %s328, 4
        %s349 = sld [smem:[#allocation5 + %s348]]
        %s350 = scalar_lea.vmem %s3, %s349
        %v351 = vld [vmem:[%s350] sm:$0x1]
        %352 = vst.msk [vmem:[%s236 + $0x2] sm:$0x1] %vm207, %v351
        %s353 = sadd.s32 %s328, 5
        %s354 = sld [smem:[#allocation5 + %s353]]
        %s355 = scalar_lea.vmem %s3, %s354
        %v356 = vld [vmem:[%s355] sm:$0x1]
        %357 = vst.msk [vmem:[%s242 + $0x2] sm:$0x1] %vm207, %v356
        %s358 = sadd.s32 %s328, 6
        %s359 = sld [smem:[#allocation5 + %s358]]
        %s360 = scalar_lea.vmem %s3, %s359
        %v361 = vld [vmem:[%s360] sm:$0x1]
        %362 = vst.msk [vmem:[%s248 + $0x2] sm:$0x1] %vm207, %v361
        %s363 = sadd.s32 %s328, 7
        %s364 = sld [smem:[#allocation5 + %s363]]
        %s365 = scalar_lea.vmem %s3, %s364
        %v366 = vld [vmem:[%s365] sm:$0x1]
        %367 = vst.msk [vmem:[%s254 + $0x2] sm:$0x1] %vm207, %v366
        %s368 = sadd.s32 %s328, 8
        %s369 = sld [smem:[#allocation5 + %s368]]
        %s370 = scalar_lea.vmem %s3, %s369
        %v371 = vld [vmem:[%s370] sm:$0x1]
        %372 = vst.msk [vmem:[%s260 + $0x2] sm:$0x1] %vm207, %v371
        %s373 = sadd.s32 %s328, 9
        %s374 = sld [smem:[#allocation5 + %s373]]
        %s375 = scalar_lea.vmem %s3, %s374
        %v376 = vld [vmem:[%s375] sm:$0x1]
        %377 = vst.msk [vmem:[%s266 + $0x2] sm:$0x1] %vm207, %v376
        %s378 = sadd.s32 %s203, 3
        %s379 = sld [smem:[#allocation6 + %s378]]
        %s380 = scalar_lea.vmem %s3, %s379
        %v381 = vld [vmem:[%s380] sm:$0x1]
        %382 = vst.msk [vmem:[#allocation2 + $0x3] sm:$0x1] %vm207, %v381
        %s383 = smul.u32 %s378, 128
        %s384 = sld [smem:[#allocation5 + %s383]]
        %s385 = scalar_lea.vmem %s3, %s384
        %v386 = vld [vmem:[%s385] sm:$0x1]
        %387 = vst.msk [vmem:[#allocation3 + $0x3] sm:$0x1] %vm207, %v386
        %s388 = sadd.s32 %s383, 1
        %s389 = sld [smem:[#allocation5 + %s388]]
        %s390 = scalar_lea.vmem %s3, %s389
        %v391 = vld [vmem:[%s390] sm:$0x1]
        %392 = vst.msk [vmem:[%s218 + $0x3] sm:$0x1] %vm207, %v391
        %s393 = sadd.s32 %s383, 2
        %s394 = sld [smem:[#allocation5 + %s393]]
        %s395 = scalar_lea.vmem %s3, %s394
        %v396 = vld [vmem:[%s395] sm:$0x1]
        %397 = vst.msk [vmem:[%s224 + $0x3] sm:$0x1] %vm207, %v396
        %s398 = sadd.s32 %s383, 3
        %s399 = sld [smem:[#allocation5 + %s398]]
        %s400 = scalar_lea.vmem %s3, %s399
        %v401 = vld [vmem:[%s400] sm:$0x1]
        %402 = vst.msk [vmem:[%s230 + $0x3] sm:$0x1] %vm207, %v401
        %s403 = sadd.s32 %s383, 4
        %s404 = sld [smem:[#allocation5 + %s403]]
        %s405 = scalar_lea.vmem %s3, %s404
        %v406 = vld [vmem:[%s405] sm:$0x1]
        %407 = vst.msk [vmem:[%s236 + $0x3] sm:$0x1] %vm207, %v406
        %s408 = sadd.s32 %s383, 5
        %s409 = sld [smem:[#allocation5 + %s408]]
        %s410 = scalar_lea.vmem %s3, %s409
        %v411 = vld [vmem:[%s410] sm:$0x1]
        %412 = vst.msk [vmem:[%s242 + $0x3] sm:$0x1] %vm207, %v411
        %s413 = sadd.s32 %s383, 6
        %s414 = sld [smem:[#allocation5 + %s413]]
        %s415 = scalar_lea.vmem %s3, %s414
        %v416 = vld [vmem:[%s415] sm:$0x1]
        %417 = vst.msk [vmem:[%s248 + $0x3] sm:$0x1] %vm207, %v416
        %s418 = sadd.s32 %s383, 7
        %s419 = sld [smem:[#allocation5 + %s418]]
        %s420 = scalar_lea.vmem %s3, %s419
        %v421 = vld [vmem:[%s420] sm:$0x1]
        %422 = vst.msk [vmem:[%s254 + $0x3] sm:$0x1] %vm207, %v421
        %s423 = sadd.s32 %s383, 8
        %s424 = sld [smem:[#allocation5 + %s423]]
        %s425 = scalar_lea.vmem %s3, %s424
        %v426 = vld [vmem:[%s425] sm:$0x1]
        %427 = vst.msk [vmem:[%s260 + $0x3] sm:$0x1] %vm207, %v426
        %s428 = sadd.s32 %s383, 9
        %s429 = sld [smem:[#allocation5 + %s428]]
        %s430 = scalar_lea.vmem %s3, %s429
        %v431 = vld [vmem:[%s430] sm:$0x1]
        %432 = vst.msk [vmem:[%s266 + $0x3] sm:$0x1] %vm207, %v431
        %s433 = sadd.s32 %s203, 4
        %s434 = sld [smem:[#allocation6 + %s433]]
        %s435 = scalar_lea.vmem %s3, %s434
        %v436 = vld [vmem:[%s435] sm:$0x1]
        %437 = vst.msk [vmem:[#allocation2 + $0x4] sm:$0x1] %vm207, %v436
        %s438 = smul.u32 %s433, 128
        %s439 = sld [smem:[#allocation5 + %s438]]
        %s440 = scalar_lea.vmem %s3, %s439
        %v441 = vld [vmem:[%s440] sm:$0x1]
        %442 = vst.msk [vmem:[#allocation3 + $0x4] sm:$0x1] %vm207, %v441
        %s443 = sadd.s32 %s438, 1
        %s444 = sld [smem:[#allocation5 + %s443]]
        %s445 = scalar_lea.vmem %s3, %s444
        %v446 = vld [vmem:[%s445] sm:$0x1]
        %447 = vst.msk [vmem:[%s218 + $0x4] sm:$0x1] %vm207, %v446
        %s448 = sadd.s32 %s438, 2
        %s449 = sld [smem:[#allocation5 + %s448]]
        %s450 = scalar_lea.vmem %s3, %s449
        %v451 = vld [vmem:[%s450] sm:$0x1]
        %452 = vst.msk [vmem:[%s224 + $0x4] sm:$0x1] %vm207, %v451
        %s453 = sadd.s32 %s438, 3
        %s454 = sld [smem:[#allocation5 + %s453]]
        %s455 = scalar_lea.vmem %s3, %s454
        %v456 = vld [vmem:[%s455] sm:$0x1]
        %457 = vst.msk [vmem:[%s230 + $0x4] sm:$0x1] %vm207, %v456
        %s458 = sadd.s32 %s438, 4
        %s459 = sld [smem:[#allocation5 + %s458]]
        %s460 = scalar_lea.vmem %s3, %s459
        %v461 = vld [vmem:[%s460] sm:$0x1]
        %462 = vst.msk [vmem:[%s236 + $0x4] sm:$0x1] %vm207, %v461
        %s463 = sadd.s32 %s438, 5
        %s464 = sld [smem:[#allocation5 + %s463]]
        %s465 = scalar_lea.vmem %s3, %s464
        %v466 = vld [vmem:[%s465] sm:$0x1]
        %467 = vst.msk [vmem:[%s242 + $0x4] sm:$0x1] %vm207, %v466
        %s468 = sadd.s32 %s438, 6
        %s469 = sld [smem:[#allocation5 + %s468]]
        %s470 = scalar_lea.vmem %s3, %s469
        %v471 = vld [vmem:[%s470] sm:$0x1]
        %472 = vst.msk [vmem:[%s248 + $0x4] sm:$0x1] %vm207, %v471
        %s473 = sadd.s32 %s438, 7
        %s474 = sld [smem:[#allocation5 + %s473]]
        %s475 = scalar_lea.vmem %s3, %s474
        %v476 = vld [vmem:[%s475] sm:$0x1]
        %477 = vst.msk [vmem:[%s254 + $0x4] sm:$0x1] %vm207, %v476
        %s478 = sadd.s32 %s438, 8
        %s479 = sld [smem:[#allocation5 + %s478]]
        %s480 = scalar_lea.vmem %s3, %s479
        %v481 = vld [vmem:[%s480] sm:$0x1]
        %482 = vst.msk [vmem:[%s260 + $0x4] sm:$0x1] %vm207, %v481
        %s483 = sadd.s32 %s438, 9
        %s484 = sld [smem:[#allocation5 + %s483]]
        %s485 = scalar_lea.vmem %s3, %s484
        %v486 = vld [vmem:[%s485] sm:$0x1]
        %487 = vst.msk [vmem:[%s266 + $0x4] sm:$0x1] %vm207, %v486
        %s488 = sadd.s32 %s203, 5
        %s489 = sld [smem:[#allocation6 + %s488]]
        %s490 = scalar_lea.vmem %s3, %s489
        %v491 = vld [vmem:[%s490] sm:$0x1]
        %492 = vst.msk [vmem:[#allocation2 + $0x5] sm:$0x1] %vm207, %v491
        %s493 = smul.u32 %s488, 128
        %s494 = sld [smem:[#allocation5 + %s493]]
        %s495 = scalar_lea.vmem %s3, %s494
        %v496 = vld [vmem:[%s495] sm:$0x1]
        %497 = vst.msk [vmem:[#allocation3 + $0x5] sm:$0x1] %vm207, %v496
        %s498 = sadd.s32 %s493, 1
        %s499 = sld [smem:[#allocation5 + %s498]]
        %s500 = scalar_lea.vmem %s3, %s499
        %v501 = vld [vmem:[%s500] sm:$0x1]
        %502 = vst.msk [vmem:[%s218 + $0x5] sm:$0x1] %vm207, %v501
        %s503 = sadd.s32 %s493, 2
        %s504 = sld [smem:[#allocation5 + %s503]]
        %s505 = scalar_lea.vmem %s3, %s504
        %v506 = vld [vmem:[%s505] sm:$0x1]
        %507 = vst.msk [vmem:[%s224 + $0x5] sm:$0x1] %vm207, %v506
        %s508 = sadd.s32 %s493, 3
        %s509 = sld [smem:[#allocation5 + %s508]]
        %s510 = scalar_lea.vmem %s3, %s509
        %v511 = vld [vmem:[%s510] sm:$0x1]
        %512 = vst.msk [vmem:[%s230 + $0x5] sm:$0x1] %vm207, %v511
        %s513 = sadd.s32 %s493, 4
        %s514 = sld [smem:[#allocation5 + %s513]]
        %s515 = scalar_lea.vmem %s3, %s514
        %v516 = vld [vmem:[%s515] sm:$0x1]
        %517 = vst.msk [vmem:[%s236 + $0x5] sm:$0x1] %vm207, %v516
        %s518 = sadd.s32 %s493, 5
        %s519 = sld [smem:[#allocation5 + %s518]]
        %s520 = scalar_lea.vmem %s3, %s519
        %v521 = vld [vmem:[%s520] sm:$0x1]
        %522 = vst.msk [vmem:[%s242 + $0x5] sm:$0x1] %vm207, %v521
        %s523 = sadd.s32 %s493, 6
        %s524 = sld [smem:[#allocation5 + %s523]]
        %s525 = scalar_lea.vmem %s3, %s524
        %v526 = vld [vmem:[%s525] sm:$0x1]
        %527 = vst.msk [vmem:[%s248 + $0x5] sm:$0x1] %vm207, %v526
        %s528 = sadd.s32 %s493, 7
        %s529 = sld [smem:[#allocation5 + %s528]]
        %s530 = scalar_lea.vmem %s3, %s529
        %v531 = vld [vmem:[%s530] sm:$0x1]
        %532 = vst.msk [vmem:[%s254 + $0x5] sm:$0x1] %vm207, %v531
        %s533 = sadd.s32 %s493, 8
        %s534 = sld [smem:[#allocation5 + %s533]]
        %s535 = scalar_lea.vmem %s3, %s534
        %v536 = vld [vmem:[%s535] sm:$0x1]
        %537 = vst.msk [vmem:[%s260 + $0x5] sm:$0x1] %vm207, %v536
        %s538 = sadd.s32 %s493, 9
        %s539 = sld [smem:[#allocation5 + %s538]]
        %s540 = scalar_lea.vmem %s3, %s539
        %v541 = vld [vmem:[%s540] sm:$0x1]
        %542 = vst.msk [vmem:[%s266 + $0x5] sm:$0x1] %vm207, %v541
        %s543 = sadd.s32 %s203, 6
        %s544 = sld [smem:[#allocation6 + %s543]]
        %s545 = scalar_lea.vmem %s3, %s544
        %v546 = vld [vmem:[%s545] sm:$0x1]
        %547 = vst.msk [vmem:[#allocation2 + $0x6] sm:$0x1] %vm207, %v546
        %s548 = smul.u32 %s543, 128
        %s549 = sld [smem:[#allocation5 + %s548]]
        %s550 = scalar_lea.vmem %s3, %s549
        %v551 = vld [vmem:[%s550] sm:$0x1]
        %552 = vst.msk [vmem:[#allocation3 + $0x6] sm:$0x1] %vm207, %v551
        %s553 = sadd.s32 %s548, 1
        %s554 = sld [smem:[#allocation5 + %s553]]
        %s555 = scalar_lea.vmem %s3, %s554
        %v556 = vld [vmem:[%s555] sm:$0x1]
        %557 = vst.msk [vmem:[%s218 + $0x6] sm:$0x1] %vm207, %v556
        %s558 = sadd.s32 %s548, 2
        %s559 = sld [smem:[#allocation5 + %s558]]
        %s560 = scalar_lea.vmem %s3, %s559
        %v561 = vld [vmem:[%s560] sm:$0x1]
        %562 = vst.msk [vmem:[%s224 + $0x6] sm:$0x1] %vm207, %v561
        %s563 = sadd.s32 %s548, 3
        %s564 = sld [smem:[#allocation5 + %s563]]
        %s565 = scalar_lea.vmem %s3, %s564
        %v566 = vld [vmem:[%s565] sm:$0x1]
        %567 = vst.msk [vmem:[%s230 + $0x6] sm:$0x1] %vm207, %v566
        %s568 = sadd.s32 %s548, 4
        %s569 = sld [smem:[#allocation5 + %s568]]
        %s570 = scalar_lea.vmem %s3, %s569
        %v571 = vld [vmem:[%s570] sm:$0x1]
        %572 = vst.msk [vmem:[%s236 + $0x6] sm:$0x1] %vm207, %v571
        %s573 = sadd.s32 %s548, 5
        %s574 = sld [smem:[#allocation5 + %s573]]
        %s575 = scalar_lea.vmem %s3, %s574
        %v576 = vld [vmem:[%s575] sm:$0x1]
        %577 = vst.msk [vmem:[%s242 + $0x6] sm:$0x1] %vm207, %v576
        %s578 = sadd.s32 %s548, 6
        %s579 = sld [smem:[#allocation5 + %s578]]
        %s580 = scalar_lea.vmem %s3, %s579
        %v581 = vld [vmem:[%s580] sm:$0x1]
        %582 = vst.msk [vmem:[%s248 + $0x6] sm:$0x1] %vm207, %v581
        %s583 = sadd.s32 %s548, 7
        %s584 = sld [smem:[#allocation5 + %s583]]
        %s585 = scalar_lea.vmem %s3, %s584
        %v586 = vld [vmem:[%s585] sm:$0x1]
        %587 = vst.msk [vmem:[%s254 + $0x6] sm:$0x1] %vm207, %v586
        %s588 = sadd.s32 %s548, 8
        %s589 = sld [smem:[#allocation5 + %s588]]
        %s590 = scalar_lea.vmem %s3, %s589
        %v591 = vld [vmem:[%s590] sm:$0x1]
        %592 = vst.msk [vmem:[%s260 + $0x6] sm:$0x1] %vm207, %v591
        %s593 = sadd.s32 %s548, 9
        %s594 = sld [smem:[#allocation5 + %s593]]
        %s595 = scalar_lea.vmem %s3, %s594
        %v596 = vld [vmem:[%s595] sm:$0x1]
        %597 = vst.msk [vmem:[%s266 + $0x6] sm:$0x1] %vm207, %v596
        %s598 = sadd.s32 %s203, 7
        %s599 = sld [smem:[#allocation6 + %s598]]
        %s600 = scalar_lea.vmem %s3, %s599
        %v601 = vld [vmem:[%s600] sm:$0x1]
        %602 = vst.msk [vmem:[#allocation2 + $0x7] sm:$0x1] %vm207, %v601
        %s603 = smul.u32 %s598, 128
        %s604 = sld [smem:[#allocation5 + %s603]]
        %s605 = scalar_lea.vmem %s3, %s604
        %v606 = vld [vmem:[%s605] sm:$0x1]
        %607 = vst.msk [vmem:[#allocation3 + $0x7] sm:$0x1] %vm207, %v606
        %s608 = sadd.s32 %s603, 1
        %s609 = sld [smem:[#allocation5 + %s608]]
        %s610 = scalar_lea.vmem %s3, %s609
        %v611 = vld [vmem:[%s610] sm:$0x1]
        %612 = vst.msk [vmem:[%s218 + $0x7] sm:$0x1] %vm207, %v611
        %s613 = sadd.s32 %s603, 2
        %s614 = sld [smem:[#allocation5 + %s613]]
        %s615 = scalar_lea.vmem %s3, %s614
        %v616 = vld [vmem:[%s615] sm:$0x1]
        %617 = vst.msk [vmem:[%s224 + $0x7] sm:$0x1] %vm207, %v616
        %s618 = sadd.s32 %s603, 3
        %s619 = sld [smem:[#allocation5 + %s618]]
        %s620 = scalar_lea.vmem %s3, %s619
        %v621 = vld [vmem:[%s620] sm:$0x1]
        %622 = vst.msk [vmem:[%s230 + $0x7] sm:$0x1] %vm207, %v621
        %s623 = sadd.s32 %s603, 4
        %s624 = sld [smem:[#allocation5 + %s623]]
        %s625 = scalar_lea.vmem %s3, %s624
        %v626 = vld [vmem:[%s625] sm:$0x1]
        %627 = vst.msk [vmem:[%s236 + $0x7] sm:$0x1] %vm207, %v626
        %s628 = sadd.s32 %s603, 5
        %s629 = sld [smem:[#allocation5 + %s628]]
        %s630 = scalar_lea.vmem %s3, %s629
        %v631 = vld [vmem:[%s630] sm:$0x1]
        %632 = vst.msk [vmem:[%s242 + $0x7] sm:$0x1] %vm207, %v631
        %s633 = sadd.s32 %s603, 6
        %s634 = sld [smem:[#allocation5 + %s633]]
        %s635 = scalar_lea.vmem %s3, %s634
        %v636 = vld [vmem:[%s635] sm:$0x1]
        %637 = vst.msk [vmem:[%s248 + $0x7] sm:$0x1] %vm207, %v636
        %s638 = sadd.s32 %s603, 7
        %s639 = sld [smem:[#allocation5 + %s638]]
        %s640 = scalar_lea.vmem %s3, %s639
        %v641 = vld [vmem:[%s640] sm:$0x1]
        %642 = vst.msk [vmem:[%s254 + $0x7] sm:$0x1] %vm207, %v641
        %s643 = sadd.s32 %s603, 8
        %s644 = sld [smem:[#allocation5 + %s643]]
        %s645 = scalar_lea.vmem %s3, %s644
        %v646 = vld [vmem:[%s645] sm:$0x1]
        %647 = vst.msk [vmem:[%s260 + $0x7] sm:$0x1] %vm207, %v646
        %s648 = sadd.s32 %s603, 9
        %s649 = sld [smem:[#allocation5 + %s648]]
        %s650 = scalar_lea.vmem %s3, %s649
        %v651 = vld [vmem:[%s650] sm:$0x1]
        %652 = vst.msk [vmem:[%s266 + $0x7] sm:$0x1] %vm207, %v651
        %v653 = vld [vmem:[%s179] sm:$0xff]
        %v654 = vld [vmem:[#allocation3] sm:$0xff]
        %656 = vset.pattern.permute.xlu0 0
        %657 = vperm.xlu0 %656, %v653
        %v658 = vpop.permute.xlu0 %657
        %v660 = vmul.f32 %v658, %v654
        %v661 = vadd.f32 %v660, 0.0
        %v662 = vld [vmem:[%s218] sm:$0xff]
        %663 = vset.pattern.permute.xlu0 1
        %664 = vperm.xlu0 %663, %v653
        %v665 = vpop.permute.xlu0 %664
        %v667 = vmul.f32 %v665, %v662
        %v668 = vadd.f32 %v661, %v667
        %v669 = vld [vmem:[%s224] sm:$0xff]
        %670 = vset.pattern.permute.xlu0 2
        %671 = vperm.xlu0 %670, %v653
        %v672 = vpop.permute.xlu0 %671
        %v674 = vmul.f32 %v672, %v669
        %v675 = vadd.f32 %v668, %v674
        %v676 = vld [vmem:[%s230] sm:$0xff]
        %677 = vset.pattern.permute.xlu0 3
        %678 = vperm.xlu0 %677, %v653
        %v679 = vpop.permute.xlu0 %678
        %v681 = vmul.f32 %v679, %v676
        %v682 = vadd.f32 %v675, %v681
        %v683 = vld [vmem:[%s236] sm:$0xff]
        %684 = vset.pattern.permute.xlu0 4
        %685 = vperm.xlu0 %684, %v653
        %v686 = vpop.permute.xlu0 %685
        %v688 = vmul.f32 %v686, %v683
        %v689 = vadd.f32 %v682, %v688
        %v690 = vld [vmem:[%s242] sm:$0xff]
        %691 = vset.pattern.permute.xlu0 5
        %692 = vperm.xlu0 %691, %v653
        %v693 = vpop.permute.xlu0 %692
        %v695 = vmul.f32 %v693, %v690
        %v696 = vadd.f32 %v689, %v695
        %v697 = vld [vmem:[%s248] sm:$0xff]
        %698 = vset.pattern.permute.xlu0 6
        %699 = vperm.xlu0 %698, %v653
        %v700 = vpop.permute.xlu0 %699
        %v702 = vmul.f32 %v700, %v697
        %v703 = vadd.f32 %v696, %v702
        %v704 = vld [vmem:[%s254] sm:$0xff]
        %705 = vset.pattern.permute.xlu0 7
        %706 = vperm.xlu0 %705, %v653
        %v707 = vpop.permute.xlu0 %706
        %v709 = vmul.f32 %v707, %v704
        %v710 = vadd.f32 %v703, %v709
        %v711 = vld [vmem:[%s260] sm:$0xff]
        %712 = vset.pattern.permute.xlu0 8
        %713 = vperm.xlu0 %712, %v653
        %v714 = vpop.permute.xlu0 %713
        %v716 = vmul.f32 %v714, %v711
        %v717 = vadd.f32 %v710, %v716
        %v718 = vld [vmem:[%s266] sm:$0xff]
        %719 = vset.pattern.permute.xlu0 9
        %720 = vperm.xlu0 %719, %v653
        %v721 = vpop.permute.xlu0 %720
        %v723 = vmul.f32 %v721, %v718
        %v724 = vadd.f32 %v717, %v723
        %v725 = vld [vmem:[#allocation2] sm:$0xff]
        %727 = vrot.lane.b32.xlu0 %v724, 16
        %v728 = vpop.permute.xlu0 %727
        %vm730 = vcmask 130048
        %v731 = vsel %vm730, %v725, %v728
        %v732 = vld [vmem:[%s4] sm:$0xff]
        %v733 = vld [vmem:[%s4 + $0x8] sm:$0xff]
        %v734 = vld [vmem:[%s4 + $0x10] sm:$0xff]
        %v735 = vld [vmem:[%s4 + $0x18] sm:$0xff]
        %vm736 = vcmask 261120
        %v738 = vsel %vm736, %v731, 0
        %740 = vmatpush.msra.mxu0 0.0
        %741 = vmatpush.msra.mxu0 0.0
        %742 = vmatpush.msra.mxu0 0.0
        %743 = vmatpush.msra.mxu0 0.0
        %744 = vmatpush.msra.mxu0 0.0
        %745 = vmatpush.msra.mxu0 0.0
        %746 = vmatpush.msra.mxu0 0.0
        %747 = vmatpush.msra.mxu0 0.0
        %748 = vmatpush.msra.mxu0 0.0
        %749 = vmatpush.msra.mxu0 0.0
        %750 = vmatpush.msra.mxu0 0.0
        %751 = vmatpush.msra.mxu0 0.0
        %752 = vmatpush.msra.mxu0 %v735
        %753 = vmatpush.msra.mxu0 %v734
        %754 = vmatpush.msra.mxu0 %v733
        %755 = vmatpush.msra.mxu0 %v732
        %756 = vmatmul.f32.gmra.mxu0 %v738
        %v757 = vpop.f32.mrf.mxu0
        %v758 = vadd.f32 0.0, %v757
        %759 = vdwg.mxu0
        %v760 = vmax.f32 %v758, 0.0
        %761 = vst [vmem:[%s202] sm:$0xff] %v760
        %s762 = sand.u32 %s111, 1
        %s763 = scalar_lea.sflag [#allocation9], %s762
        %s764 = sand.u32 %s111, 1
        %s765 = smul.addr %s764, 8
        %s766 = scalar_lea.vmem [#allocation10], %s765
        // Predicated region
        $region37: #{tpu_custom_call.1} parent=31 // pred_check
          %p767 = pneg %p121
        $region38: #{tpu_custom_call.1} parent=31 // pred_check_branch
          %769 = sbr.rel (%p767) target = $region40
        $region39: #{tpu_custom_call.1} parent=31 // pred_region
          %771 = vsyncadd %s763, 0
          %s772 = smul.addr %s35, 8
          %s773 = scalar_lea.hbm %s5, %s772
          %s775 = sshll.u32 %s766, 4
          %s776 = int_to_ptr.vmem [resolvable:$true] %s775
          %s777 = sshll.u32 %s773, 4
          %s778 = int_to_ptr.hbm [resolvable:$true] %s777
          %780 = dma.vmem_to_hbm [thread:$0]  %s776, 128, %s778, %s763
        $region40: #{tpu_custom_call.1} parent=31 // pred_fallthru
          _
      $region32: #{tpu_custom_call.1} parent=5 // pred_fallthru
        _
      %p781 = scmp.le.s32.totalorder 2, %s30
      // Predicated region
      $region41: #{tpu_custom_call.1} parent=5 // pred_check
        %p782 = pneg %p781
      $region42: #{tpu_custom_call.1} parent=5 // pred_check_branch
        %784 = sbr.rel (%p782) target = $region44
      $region43: #{tpu_custom_call.1} parent=5 // pred_region
        %s785 = ssub.s32 %s30, 2
        // Predicated region
        $region45: #{tpu_custom_call.1} parent=43 // pred_check
          %p786 = pneg %p127
        $region46: #{tpu_custom_call.1} parent=43 // pred_check_branch
          %788 = sbr.rel (%p786) target = $region48
        $region47: #{tpu_custom_call.1} parent=43 // pred_region
          %s789 = sand.u32 %s112, 1
          %s790 = scalar_lea.sflag [#allocation9], %s789
          %s791 = sand.u32 %s112, 1
          %s792 = smul.addr %s791, 8
          %s793 = scalar_lea.vmem [#allocation10], %s792
          %795 = dma.done %s790, 128
        $region48: #{tpu_custom_call.1} parent=43 // pred_fallthru
          _
      $region44: #{tpu_custom_call.1} parent=5 // pred_fallthru
        _
    $region6: #{tpu_custom_call.1} parent=1 // loop_footer
      %s34 = sadd.s32 1, %s30
    $region7: #{tpu_custom_call.1} parent=1 // loop_footer_branch
      %29 = sbr.rel target = $region3
    $region8: #{tpu_custom_call.1} parent=1 // loop_exit
      _
    %796 = vsyncpa [#allocation8], 1
    %s797 = scalar_lea.sflag [#allocation8], 1
    %798 = vsyncpa %s797, 1
    %799 = vsyncpa [#allocation9], 1
    %s800 = scalar_lea.sflag [#allocation9], 1
    %801 = vsyncpa %s800, 1

</llo_original>
